<compile_context>
chip_gen: v5e
topology: v5e:2x2
jax: 0.10.0
libtpu: 0.0.40
codegen_flags: <defaults>
</compile_context>

<pallas_src>
import functools

import jax
import jax.numpy as jnp
from jax import lax
from jax.experimental import pallas as pl
from jax.experimental.pallas import tpu as pltpu

LANE = 128


def _round_up(n, m):
    return ((n + m - 1) // m) * m


def encoder_kernel(x_ref,
                   w1, b1, w2, b2, w3, b3, wz, bz,
                   w4, b4, w5, b5, w6, b6, wx, bx,
                   z_ref, xbar_ref, *, n_z):
    """Fused forward pass for one (batch_tile, 128)-padded batch tile."""

    def dense(h, w_ref, b_ref):
        # bf16 operands -> MXU, f32 accumulate, f32 bias add.
        return (jnp.dot(h.astype(jnp.bfloat16), w_ref[...],
                        preferred_element_type=jnp.float32)
                + b_ref[...])

    x = x_ref[...]                                   # bf16 (tile, n_in_pad)

    # ---- Encoder ----
    h1 = jnp.maximum(dense(x, w1, b1), 0.0)
    h2 = jnp.maximum(dense(h1, w2, b2), 0.0)
    h3 = jnp.maximum(dense(h2, w3, b3), 0.0)

    # ---- z = softmax(z_layer(h3), dim=1) over the *real* n_z lanes ----
    logits = dense(h3, wz, bz)
    lane_idx = lax.broadcasted_iota(jnp.int32, logits.shape, 1)
    logits = jnp.where(lane_idx < n_z, logits, -1e30)   # kill padded lanes
    m = jnp.max(logits, axis=-1, keepdims=True)
    e = jnp.exp(logits - m)
    z = e * pl.reciprocal(jnp.sum(e, axis=-1, keepdims=True), approx=True)
    z_ref[...] = z.astype(z_ref.dtype)               # lane-dense 128-wide store

    # ---- Decoder (padded z lanes are exactly 0, padded W rows are 0) ----
    d1 = jnp.maximum(dense(z, w4, b4), 0.0)
    d2 = jnp.maximum(dense(d1, w5, b5), 0.0)
    d3 = jnp.maximum(dense(d2, w6, b6), 0.0)
    xbar_ref[...] = dense(d3, wx, bx).astype(xbar_ref.dtype)


def encoder_forward(x, params, *, batch_tile=256):
    """x: (B, n_input) float. params: 8 tuples (W, b), W stored as (in, out).

    Returns (z, x_bar) in f32 with the original (unpadded) shapes.
    Batch is zero-padded up to a multiple of batch_tile; features are padded
    to multiples of 128 lanes; results are sliced back before returning.
    """
    assert batch_tile % 8 == 0
    B, n_input = x.shape
    n_z = params[3][0].shape[1]

    B_pad = _round_up(max(B, 1), batch_tile)
    n_in_pad = _round_up(n_input, LANE)
    n_z_pad = _round_up(n_z, LANE)

    # Input: bf16, zero-padded batch rows + feature lanes.
    x_pad = jnp.zeros((B_pad, n_in_pad), jnp.bfloat16)
    x_pad = x_pad.at[:B, :n_input].set(x.astype(jnp.bfloat16))

    # Weights: bf16, zero-padded to (in_pad, out_pad). Biases: f32 (1, out_pad).
    flat = []
    in_specs = [pl.BlockSpec((batch_tile, n_in_pad), lambda i: (i, 0))]
    for w, b in params:
        d_in, d_out = w.shape
        in_p, out_p = _round_up(d_in, LANE), _round_up(d_out, LANE)
        w_pad = jnp.zeros((in_p, out_p), jnp.bfloat16)
        w_pad = w_pad.at[:d_in, :d_out].set(w.astype(jnp.bfloat16))
        b_pad = jnp.zeros((1, out_p), jnp.float32)
        b_pad = b_pad.at[:, :d_out].set(b.reshape(1, -1).astype(jnp.float32))
        flat += [w_pad, b_pad]
        in_specs.append(pl.BlockSpec((in_p, out_p), lambda i: (0, 0)))
        in_specs.append(pl.BlockSpec((1, out_p), lambda i: (0, 0)))

    out_shapes = (
        jax.ShapeDtypeStruct((B_pad, n_z_pad), jnp.float32),
        jax.ShapeDtypeStruct((B_pad, n_in_pad), jnp.float32),
    )
    out_specs = (
        pl.BlockSpec((batch_tile, n_z_pad), lambda i: (i, 0)),
        pl.BlockSpec((batch_tile, n_in_pad), lambda i: (i, 0)),
    )

    # Advisory cost estimate so XLA schedules neighbors sensibly.
    flops = 2 * B_pad * sum(_round_up(w.shape[0], LANE) *
                            _round_up(w.shape[1], LANE) for w, _ in params)
    bytes_accessed = (x_pad.size * 2
                      + sum(int(a.size) * a.dtype.itemsize for a in flat)
                      + B_pad * (n_z_pad + n_in_pad) * 4)
    cost = pl.CostEstimate(flops=int(flops),
                           transcendentals=int(B_pad * n_z_pad),
                           bytes_accessed=int(bytes_accessed))

    z_pad, xbar_pad = pl.pallas_call(
        functools.partial(encoder_kernel, n_z=n_z),
        out_shape=out_shapes,
        grid_spec=pltpu.PrefetchScalarGridSpec(
            num_scalar_prefetch=0,
            grid=(B_pad // batch_tile,),
            in_specs=in_specs,
            out_specs=out_specs,
        ),
        compiler_params=pltpu.CompilerParams(
            dimension_semantics=("parallel",),
            vmem_limit_bytes=32 * 1024 * 1024,
        ),
        cost_estimate=cost,
    )(x_pad, *flat)

    return z_pad[:B, :n_z], xbar_pad[:B, :n_input]


def make_params(key, dims):
    """dims: [n_input, n_enc_1, n_enc_2, n_enc_3, n_z, n_dec_1, n_dec_2, n_dec_3, n_input]"""
    params = []
    for i in range(len(dims) - 1):
        d_in, d_out = dims[i], dims[i + 1]
        key, kw, kb = jax.random.split(key, 3)
        scale = 1.0 / jnp.sqrt(jnp.float32(d_in))
        # Stored as (in, out) == PyTorch weight.T ; bias kept 2-D (1, out).
        w = jax.random.uniform(kw, (d_in, d_out), jnp.float32, -scale, scale)
        b = jax.random.uniform(kb, (1, d_out), jnp.float32, -scale, scale)
        params.append((w, b))
    return params


def encoder_reference(x, params):
    """Pure-JAX reference mirroring the kernel numerics (bf16 matmul operands,
    f32 accumulation / activations / softmax), same math as the PyTorch module."""
    def dense(h, w, b):
        return (jnp.dot(h.astype(jnp.bfloat16), w.astype(jnp.bfloat16),
                        preferred_element_type=jnp.float32)
                + b.reshape(1, -1).astype(jnp.float32))

    h = x
    for w, b in params[:3]:
        h = jax.nn.relu(dense(h, w, b))
    z = jax.nn.softmax(dense(h, params[3][0], params[3][1]), axis=1)
    h = z
    for w, b in params[4:7]:
        h = jax.nn.relu(dense(h, w, b))
    x_bar = dense(h, params[7][0], params[7][1])
    return z, x_bar


if __name__ == "__main__":
    # Shapes consistent with the module's constructor; batch chosen so the
    # grid has 2 parallel tiles of 256 rows (keeps both v7x TCs busy).
    n_input, n_enc_1, n_enc_2, n_enc_3 = 32, 64, 64, 128
    n_z, n_dec_1, n_dec_2, n_dec_3 = 16, 128, 64, 64
    batch = 512

    key = jax.random.PRNGKey(0)
    key, kx = jax.random.split(key)
    x = jax.random.normal(kx, (batch, n_input), jnp.float32)

    dims = [n_input, n_enc_1, n_enc_2, n_enc_3, n_z,
            n_dec_1, n_dec_2, n_dec_3, n_input]
    params = make_params(key, dims)

    z, x_bar = encoder_forward(x, params, batch_tile=256)
    jax.block_until_ready((z, x_bar))

    z_ref, x_bar_ref = encoder_reference(x, params)
    assert z.shape == (batch, n_z) and x_bar.shape == (batch, n_input)
    # Small slack for the approx (EUP) reciprocal in the softmax denominator.
    assert jnp.allclose(z, z_ref, atol=1e-4, rtol=1e-3), \
        float(jnp.max(jnp.abs(z - z_ref)))
    assert jnp.allclose(x_bar, x_bar_ref, atol=2e-3, rtol=2e-3), \
        float(jnp.max(jnp.abs(x_bar - x_bar_ref)))

    print("KERNEL_OK")
</pallas_src>

<mosaic_0001>
module attributes {stable_mosaic.version = 11 : i64} {
  func.func @encoder_kernel(%arg0: i32, %arg1: memref<256x128xbf16, #tpu.memory_space<vmem>>, %arg2: memref<128x128xbf16, #tpu.memory_space<vmem>>, %arg3: memref<1x128xf32, #tpu.memory_space<vmem>>, %arg4: memref<128x128xbf16, #tpu.memory_space<vmem>>, %arg5: memref<1x128xf32, #tpu.memory_space<vmem>>, %arg6: memref<128x128xbf16, #tpu.memory_space<vmem>>, %arg7: memref<1x128xf32, #tpu.memory_space<vmem>>, %arg8: memref<128x128xbf16, #tpu.memory_space<vmem>>, %arg9: memref<1x128xf32, #tpu.memory_space<vmem>>, %arg10: memref<128x128xbf16, #tpu.memory_space<vmem>>, %arg11: memref<1x128xf32, #tpu.memory_space<vmem>>, %arg12: memref<128x128xbf16, #tpu.memory_space<vmem>>, %arg13: memref<1x128xf32, #tpu.memory_space<vmem>>, %arg14: memref<128x128xbf16, #tpu.memory_space<vmem>>, %arg15: memref<1x128xf32, #tpu.memory_space<vmem>>, %arg16: memref<128x128xbf16, #tpu.memory_space<vmem>>, %arg17: memref<1x128xf32, #tpu.memory_space<vmem>>, %arg18: memref<256x128xf32, #tpu.memory_space<vmem>>, %arg19: memref<256x128xf32, #tpu.memory_space<vmem>>) attributes {dimension_semantics = [#tpu.dimension_semantics<parallel>], iteration_bounds = array<i64: 2>, scalar_prefetch = 0 : i64, scratch_operands = 0 : i64, tpu.core_type = #tpu.core_type<tc>, window_params = [{transform_indices = @transform_0, window_bounds = array<i64: 256, 128>}, {pipeline_mode = #tpu.pipeline_mode<synchronous>, transform_indices = @transform_1, window_bounds = array<i64: 128, 128>}, {pipeline_mode = #tpu.pipeline_mode<synchronous>, transform_indices = @transform_2, window_bounds = array<i64: 1, 128>}, {pipeline_mode = #tpu.pipeline_mode<synchronous>, transform_indices = @transform_3, window_bounds = array<i64: 128, 128>}, {pipeline_mode = #tpu.pipeline_mode<synchronous>, transform_indices = @transform_4, window_bounds = array<i64: 1, 128>}, {pipeline_mode = #tpu.pipeline_mode<synchronous>, transform_indices = @transform_5, window_bounds = array<i64: 128, 128>}, {pipeline_mode = #tpu.pipeline_mode<synchronous>, transform_indices = @transform_6, window_bounds = array<i64: 1, 128>}, {pipeline_mode = #tpu.pipeline_mode<synchronous>, transform_indices = @transform_7, window_bounds = array<i64: 128, 128>}, {pipeline_mode = #tpu.pipeline_mode<synchronous>, transform_indices = @transform_8, window_bounds = array<i64: 1, 128>}, {pipeline_mode = #tpu.pipeline_mode<synchronous>, transform_indices = @transform_9, window_bounds = array<i64: 128, 128>}, {pipeline_mode = #tpu.pipeline_mode<synchronous>, transform_indices = @transform_10, window_bounds = array<i64: 1, 128>}, {pipeline_mode = #tpu.pipeline_mode<synchronous>, transform_indices = @transform_11, window_bounds = array<i64: 128, 128>}, {pipeline_mode = #tpu.pipeline_mode<synchronous>, transform_indices = @transform_12, window_bounds = array<i64: 1, 128>}, {pipeline_mode = #tpu.pipeline_mode<synchronous>, transform_indices = @transform_13, window_bounds = array<i64: 128, 128>}, {pipeline_mode = #tpu.pipeline_mode<synchronous>, transform_indices = @transform_14, window_bounds = array<i64: 1, 128>}, {pipeline_mode = #tpu.pipeline_mode<synchronous>, transform_indices = @transform_15, window_bounds = array<i64: 128, 128>}, {pipeline_mode = #tpu.pipeline_mode<synchronous>, transform_indices = @transform_16, window_bounds = array<i64: 1, 128>}, {transform_indices = @transform_17, window_bounds = array<i64: 256, 128>}, {transform_indices = @transform_18, window_bounds = array<i64: 256, 128>}]} {
    %c0 = arith.constant 0 : index
    %c0_0 = arith.constant 0 : index
    %0 = vector.load %arg1[%c0, %c0_0] : memref<256x128xbf16, #tpu.memory_space<vmem>>, vector<256x128xbf16>
    %c0_1 = arith.constant 0 : index
    %c0_2 = arith.constant 0 : index
    %1 = vector.load %arg2[%c0_1, %c0_2] : memref<128x128xbf16, #tpu.memory_space<vmem>>, vector<128x128xbf16>
    %cst = arith.constant dense<0.000000e+00> : vector<256x128xf32>
    %2 = tpu.matmul %0, %1, %cst {dimension_numbers = #tpu.dot_dimension_numbers<[1], [0], [0], [1], [0, 0, 1, 1], [], []>} : vector<256x128xbf16>, vector<128x128xbf16>, vector<256x128xf32> -> vector<256x128xf32>
    %c0_3 = arith.constant 0 : index
    %c0_4 = arith.constant 0 : index
    %3 = vector.load %arg3[%c0_3, %c0_4] : memref<1x128xf32, #tpu.memory_space<vmem>>, vector<1x128xf32>
    %4 = vector.broadcast %3 : vector<1x128xf32> to vector<256x128xf32>
    %5 = arith.addf %2, %4 : vector<256x128xf32>
    %cst_5 = arith.constant 0.000000e+00 : f32
    %6 = vector.broadcast %cst_5 : f32 to vector<256x128xf32>
    %7 = arith.maximumf %5, %6 : vector<256x128xf32>
    %8 = arith.truncf %7 : vector<256x128xf32> to vector<256x128xbf16>
    %c0_6 = arith.constant 0 : index
    %c0_7 = arith.constant 0 : index
    %9 = vector.load %arg4[%c0_6, %c0_7] : memref<128x128xbf16, #tpu.memory_space<vmem>>, vector<128x128xbf16>
    %cst_8 = arith.constant dense<0.000000e+00> : vector<256x128xf32>
    %10 = tpu.matmul %8, %9, %cst_8 {dimension_numbers = #tpu.dot_dimension_numbers<[1], [0], [0], [1], [0, 0, 1, 1], [], []>} : vector<256x128xbf16>, vector<128x128xbf16>, vector<256x128xf32> -> vector<256x128xf32>
    %c0_9 = arith.constant 0 : index
    %c0_10 = arith.constant 0 : index
    %11 = vector.load %arg5[%c0_9, %c0_10] : memref<1x128xf32, #tpu.memory_space<vmem>>, vector<1x128xf32>
    %12 = vector.broadcast %11 : vector<1x128xf32> to vector<256x128xf32>
    %13 = arith.addf %10, %12 : vector<256x128xf32>
    %cst_11 = arith.constant 0.000000e+00 : f32
    %14 = vector.broadcast %cst_11 : f32 to vector<256x128xf32>
    %15 = arith.maximumf %13, %14 : vector<256x128xf32>
    %16 = arith.truncf %15 : vector<256x128xf32> to vector<256x128xbf16>
    %c0_12 = arith.constant 0 : index
    %c0_13 = arith.constant 0 : index
    %17 = vector.load %arg6[%c0_12, %c0_13] : memref<128x128xbf16, #tpu.memory_space<vmem>>, vector<128x128xbf16>
    %cst_14 = arith.constant dense<0.000000e+00> : vector<256x128xf32>
    %18 = tpu.matmul %16, %17, %cst_14 {dimension_numbers = #tpu.dot_dimension_numbers<[1], [0], [0], [1], [0, 0, 1, 1], [], []>} : vector<256x128xbf16>, vector<128x128xbf16>, vector<256x128xf32> -> vector<256x128xf32>
    %c0_15 = arith.constant 0 : index
    %c0_16 = arith.constant 0 : index
    %19 = vector.load %arg7[%c0_15, %c0_16] : memref<1x128xf32, #tpu.memory_space<vmem>>, vector<1x128xf32>
    %20 = vector.broadcast %19 : vector<1x128xf32> to vector<256x128xf32>
    %21 = arith.addf %18, %20 : vector<256x128xf32>
    %cst_17 = arith.constant 0.000000e+00 : f32
    %22 = vector.broadcast %cst_17 : f32 to vector<256x128xf32>
    %23 = arith.maximumf %21, %22 : vector<256x128xf32>
    %24 = arith.truncf %23 : vector<256x128xf32> to vector<256x128xbf16>
    %c0_18 = arith.constant 0 : index
    %c0_19 = arith.constant 0 : index
    %25 = vector.load %arg8[%c0_18, %c0_19] : memref<128x128xbf16, #tpu.memory_space<vmem>>, vector<128x128xbf16>
    %cst_20 = arith.constant dense<0.000000e+00> : vector<256x128xf32>
    %26 = tpu.matmul %24, %25, %cst_20 {dimension_numbers = #tpu.dot_dimension_numbers<[1], [0], [0], [1], [0, 0, 1, 1], [], []>} : vector<256x128xbf16>, vector<128x128xbf16>, vector<256x128xf32> -> vector<256x128xf32>
    %c0_21 = arith.constant 0 : index
    %c0_22 = arith.constant 0 : index
    %27 = vector.load %arg9[%c0_21, %c0_22] : memref<1x128xf32, #tpu.memory_space<vmem>>, vector<1x128xf32>
    %28 = vector.broadcast %27 : vector<1x128xf32> to vector<256x128xf32>
    %29 = arith.addf %26, %28 : vector<256x128xf32>
    %30 = tpu.iota {dimensions = array<i32: 1>} : vector<256x128xi32>
    %c16_i32 = arith.constant 16 : i32
    %31 = vector.broadcast %c16_i32 : i32 to vector<256x128xi32>
    %32 = arith.cmpi slt, %30, %31 : vector<256x128xi32>
    %cst_23 = arith.constant -1.000000e+30 : f32
    %33 = vector.broadcast %cst_23 : f32 to vector<256x128xf32>
    %34 = arith.select %32, %29, %33 : vector<256x128xi1>, vector<256x128xf32>
    %cst_24 = arith.constant dense<0xFF800000> : vector<256xf32>
    %35 = vector.multi_reduction <maximumf>, %34, %cst_24 [1] : vector<256x128xf32> to vector<256xf32>
    %36 = vector.shape_cast %35 : vector<256xf32> to vector<256x1xf32>
    %37 = vector.broadcast %36 : vector<256x1xf32> to vector<256x128xf32>
    %38 = arith.subf %34, %37 : vector<256x128xf32>
    %39 = math.exp %38 : vector<256x128xf32>
    %cst_25 = arith.constant dense<0.000000e+00> : vector<256xf32>
    %40 = vector.multi_reduction <add>, %39, %cst_25 [1] : vector<256x128xf32> to vector<256xf32>
    %41 = vector.shape_cast %40 : vector<256xf32> to vector<256x1xf32>
    %42 = tpu.reciprocal %41 {approx = true} : vector<256x1xf32> -> vector<256x1xf32>
    %43 = vector.broadcast %42 : vector<256x1xf32> to vector<256x128xf32>
    %44 = arith.mulf %39, %43 : vector<256x128xf32>
    %c0_26 = arith.constant 0 : index
    %c0_27 = arith.constant 0 : index
    %45 = vector.load %arg18[%c0_26, %c0_27] : memref<256x128xf32, #tpu.memory_space<vmem>>, vector<256x128xf32>
    tpu.vector_store %arg18[%c0_26, %c0_27], %44 {strides = array<i32>} : memref<256x128xf32, #tpu.memory_space<vmem>>, vector<256x128xf32>,
    %46 = arith.truncf %44 : vector<256x128xf32> to vector<256x128xbf16>
    %c0_28 = arith.constant 0 : index
    %c0_29 = arith.constant 0 : index
    %47 = vector.load %arg10[%c0_28, %c0_29] : memref<128x128xbf16, #tpu.memory_space<vmem>>, vector<128x128xbf16>
    %cst_30 = arith.constant dense<0.000000e+00> : vector<256x128xf32>
    %48 = tpu.matmul %46, %47, %cst_30 {dimension_numbers = #tpu.dot_dimension_numbers<[1], [0], [0], [1], [0, 0, 1, 1], [], []>} : vector<256x128xbf16>, vector<128x128xbf16>, vector<256x128xf32> -> vector<256x128xf32>
    %c0_31 = arith.constant 0 : index
    %c0_32 = arith.constant 0 : index
    %49 = vector.load %arg11[%c0_31, %c0_32] : memref<1x128xf32, #tpu.memory_space<vmem>>, vector<1x128xf32>
    %50 = vector.broadcast %49 : vector<1x128xf32> to vector<256x128xf32>
    %51 = arith.addf %48, %50 : vector<256x128xf32>
    %cst_33 = arith.constant 0.000000e+00 : f32
    %52 = vector.broadcast %cst_33 : f32 to vector<256x128xf32>
    %53 = arith.maximumf %51, %52 : vector<256x128xf32>
    %54 = arith.truncf %53 : vector<256x128xf32> to vector<256x128xbf16>
    %c0_34 = arith.constant 0 : index
    %c0_35 = arith.constant 0 : index
    %55 = vector.load %arg12[%c0_34, %c0_35] : memref<128x128xbf16, #tpu.memory_space<vmem>>, vector<128x128xbf16>
    %cst_36 = arith.constant dense<0.000000e+00> : vector<256x128xf32>
    %56 = tpu.matmul %54, %55, %cst_36 {dimension_numbers = #tpu.dot_dimension_numbers<[1], [0], [0], [1], [0, 0, 1, 1], [], []>} : vector<256x128xbf16>, vector<128x128xbf16>, vector<256x128xf32> -> vector<256x128xf32>
    %c0_37 = arith.constant 0 : index
    %c0_38 = arith.constant 0 : index
    %57 = vector.load %arg13[%c0_37, %c0_38] : memref<1x128xf32, #tpu.memory_space<vmem>>, vector<1x128xf32>
    %58 = vector.broadcast %57 : vector<1x128xf32> to vector<256x128xf32>
    %59 = arith.addf %56, %58 : vector<256x128xf32>
    %cst_39 = arith.constant 0.000000e+00 : f32
    %60 = vector.broadcast %cst_39 : f32 to vector<256x128xf32>
    %61 = arith.maximumf %59, %60 : vector<256x128xf32>
    %62 = arith.truncf %61 : vector<256x128xf32> to vector<256x128xbf16>
    %c0_40 = arith.constant 0 : index
    %c0_41 = arith.constant 0 : index
    %63 = vector.load %arg14[%c0_40, %c0_41] : memref<128x128xbf16, #tpu.memory_space<vmem>>, vector<128x128xbf16>
    %cst_42 = arith.constant dense<0.000000e+00> : vector<256x128xf32>
    %64 = tpu.matmul %62, %63, %cst_42 {dimension_numbers = #tpu.dot_dimension_numbers<[1], [0], [0], [1], [0, 0, 1, 1], [], []>} : vector<256x128xbf16>, vector<128x128xbf16>, vector<256x128xf32> -> vector<256x128xf32>
    %c0_43 = arith.constant 0 : index
    %c0_44 = arith.constant 0 : index
    %65 = vector.load %arg15[%c0_43, %c0_44] : memref<1x128xf32, #tpu.memory_space<vmem>>, vector<1x128xf32>
    %66 = vector.broadcast %65 : vector<1x128xf32> to vector<256x128xf32>
    %67 = arith.addf %64, %66 : vector<256x128xf32>
    %cst_45 = arith.constant 0.000000e+00 : f32
    %68 = vector.broadcast %cst_45 : f32 to vector<256x128xf32>
    %69 = arith.maximumf %67, %68 : vector<256x128xf32>
    %70 = arith.truncf %69 : vector<256x128xf32> to vector<256x128xbf16>
    %c0_46 = arith.constant 0 : index
    %c0_47 = arith.constant 0 : index
    %71 = vector.load %arg16[%c0_46, %c0_47] : memref<128x128xbf16, #tpu.memory_space<vmem>>, vector<128x128xbf16>
    %cst_48 = arith.constant dense<0.000000e+00> : vector<256x128xf32>
    %72 = tpu.matmul %70, %71, %cst_48 {dimension_numbers = #tpu.dot_dimension_numbers<[1], [0], [0], [1], [0, 0, 1, 1], [], []>} : vector<256x128xbf16>, vector<128x128xbf16>, vector<256x128xf32> -> vector<256x128xf32>
    %c0_49 = arith.constant 0 : index
    %c0_50 = arith.constant 0 : index
    %73 = vector.load %arg17[%c0_49, %c0_50] : memref<1x128xf32, #tpu.memory_space<vmem>>, vector<1x128xf32>
    %74 = vector.broadcast %73 : vector<1x128xf32> to vector<256x128xf32>
    %75 = arith.addf %72, %74 : vector<256x128xf32>
    %c0_51 = arith.constant 0 : index
    %c0_52 = arith.constant 0 : index
    %76 = vector.load %arg19[%c0_51, %c0_52] : memref<256x128xf32, #tpu.memory_space<vmem>>, vector<256x128xf32>
    tpu.vector_store %arg19[%c0_51, %c0_52], %75 {strides = array<i32>} : memref<256x128xf32, #tpu.memory_space<vmem>>, vector<256x128xf32>,
    return
  }
  func.func @transform_0(%arg0: i32) -> (i32, i32) {
    %c0_i32 = arith.constant 0 : i32
    %c0_i32_0 = arith.constant 0 : i32
    return %arg0, %c0_i32 : i32, i32
  }
  func.func @transform_1(%arg0: i32) -> (i32, i32) {
    %c0_i32 = arith.constant 0 : i32
    %c0_i32_0 = arith.constant 0 : i32
    %c0_i32_1 = arith.constant 0 : i32
    return %c0_i32, %c0_i32_0 : i32, i32
  }
  func.func @transform_2(%arg0: i32) -> (i32, i32) {
    %c0_i32 = arith.constant 0 : i32
    %c0_i32_0 = arith.constant 0 : i32
    %c0_i32_1 = arith.constant 0 : i32
    return %c0_i32, %c0_i32_0 : i32, i32
  }
  func.func @transform_3(%arg0: i32) -> (i32, i32) {
    %c0_i32 = arith.constant 0 : i32
    %c0_i32_0 = arith.constant 0 : i32
    %c0_i32_1 = arith.constant 0 : i32
    return %c0_i32, %c0_i32_0 : i32, i32
  }
  func.func @transform_4(%arg0: i32) -> (i32, i32) {
    %c0_i32 = arith.constant 0 : i32
    %c0_i32_0 = arith.constant 0 : i32
    %c0_i32_1 = arith.constant 0 : i32
    return %c0_i32, %c0_i32_0 : i32, i32
  }
  func.func @transform_5(%arg0: i32) -> (i32, i32) {
    %c0_i32 = arith.constant 0 : i32
    %c0_i32_0 = arith.constant 0 : i32
    %c0_i32_1 = arith.constant 0 : i32
    return %c0_i32, %c0_i32_0 : i32, i32
  }
  func.func @transform_6(%arg0: i32) -> (i32, i32) {
    %c0_i32 = arith.constant 0 : i32
    %c0_i32_0 = arith.constant 0 : i32
    %c0_i32_1 = arith.constant 0 : i32
    return %c0_i32, %c0_i32_0 : i32, i32
  }
  func.func @transform_7(%arg0: i32) -> (i32, i32) {
    %c0_i32 = arith.constant 0 : i32
    %c0_i32_0 = arith.constant 0 : i32
    %c0_i32_1 = arith.constant 0 : i32
    return %c0_i32, %c0_i32_0 : i32, i32
  }
  func.func @transform_8(%arg0: i32) -> (i32, i32) {
    %c0_i32 = arith.constant 0 : i32
    %c0_i32_0 = arith.constant 0 : i32
    %c0_i32_1 = arith.constant 0 : i32
    return %c0_i32, %c0_i32_0 : i32, i32
  }
  func.func @transform_9(%arg0: i32) -> (i32, i32) {
    %c0_i32 = arith.constant 0 : i32
    %c0_i32_0 = arith.constant 0 : i32
    %c0_i32_1 = arith.constant 0 : i32
    return %c0_i32, %c0_i32_0 : i32, i32
  }
  func.func @transform_10(%arg0: i32) -> (i32, i32) {
    %c0_i32 = arith.constant 0 : i32
    %c0_i32_0 = arith.constant 0 : i32
    %c0_i32_1 = arith.constant 0 : i32
    return %c0_i32, %c0_i32_0 : i32, i32
  }
  func.func @transform_11(%arg0: i32) -> (i32, i32) {
    %c0_i32 = arith.constant 0 : i32
    %c0_i32_0 = arith.constant 0 : i32
    %c0_i32_1 = arith.constant 0 : i32
    return %c0_i32, %c0_i32_0 : i32, i32
  }
  func.func @transform_12(%arg0: i32) -> (i32, i32) {
    %c0_i32 = arith.constant 0 : i32
    %c0_i32_0 = arith.constant 0 : i32
    %c0_i32_1 = arith.constant 0 : i32
    return %c0_i32, %c0_i32_0 : i32, i32
  }
  func.func @transform_13(%arg0: i32) -> (i32, i32) {
    %c0_i32 = arith.constant 0 : i32
    %c0_i32_0 = arith.constant 0 : i32
    %c0_i32_1 = arith.constant 0 : i32
    return %c0_i32, %c0_i32_0 : i32, i32
  }
  func.func @transform_14(%arg0: i32) -> (i32, i32) {
    %c0_i32 = arith.constant 0 : i32
    %c0_i32_0 = arith.constant 0 : i32
    %c0_i32_1 = arith.constant 0 : i32
    return %c0_i32, %c0_i32_0 : i32, i32
  }
  func.func @transform_15(%arg0: i32) -> (i32, i32) {
    %c0_i32 = arith.constant 0 : i32
    %c0_i32_0 = arith.constant 0 : i32
    %c0_i32_1 = arith.constant 0 : i32
    return %c0_i32, %c0_i32_0 : i32, i32
  }
  func.func @transform_16(%arg0: i32) -> (i32, i32) {
    %c0_i32 = arith.constant 0 : i32
    %c0_i32_0 = arith.constant 0 : i32
    %c0_i32_1 = arith.constant 0 : i32
    return %c0_i32, %c0_i32_0 : i32, i32
  }
  func.func @transform_17(%arg0: i32) -> (i32, i32) {
    %c0_i32 = arith.constant 0 : i32
    %c0_i32_0 = arith.constant 0 : i32
    return %arg0, %c0_i32 : i32, i32
  }
  func.func @transform_18(%arg0: i32) -> (i32, i32) {
    %c0_i32 = arith.constant 0 : i32
    %c0_i32_0 = arith.constant 0 : i32
    return %arg0, %c0_i32 : i32, i32
  }
}

</mosaic_0001>

<llo_original>
// kernel: tpu_custom_call.1
$region0: #{tpu_custom_call.1}
  #allocation0 [shape = 'u32[]', space=smem, size = 0x4, offset = 0x4, fixed_abs, tag = 'smem constant byte address 0x4 - core index']
  #allocation1 [shape = 'u32[72,128]{1,0:T(1,128)}', space=vmem, size = 0x9000, scoped, tag = 'internal scratch']
  %s0 = inlined_call_operand.hbm [shape: bf16[512,128], index: 0, kind: input, shape index: {}]
  %s1 = inlined_call_operand.hbm [shape: bf16[128,128], index: 1, kind: input, shape index: {}]
  %s2 = inlined_call_operand.vmem [shape: f32[1,128], index: 2, kind: input, shape index: {}]
  %s3 = inlined_call_operand.hbm [shape: bf16[128,128], index: 3, kind: input, shape index: {}]
  %s4 = inlined_call_operand.vmem [shape: f32[1,128], index: 4, kind: input, shape index: {}]
  %s5 = inlined_call_operand.hbm [shape: bf16[128,128], index: 5, kind: input, shape index: {}]
  %s6 = inlined_call_operand.vmem [shape: f32[1,128], index: 6, kind: input, shape index: {}]
  %s7 = inlined_call_operand.hbm [shape: bf16[128,128], index: 7, kind: input, shape index: {}]
  %s8 = inlined_call_operand.vmem [shape: f32[1,128], index: 8, kind: input, shape index: {}]
  %s9 = inlined_call_operand.hbm [shape: bf16[128,128], index: 9, kind: input, shape index: {}]
  %s10 = inlined_call_operand.vmem [shape: f32[1,128], index: 10, kind: input, shape index: {}]
  %s11 = inlined_call_operand.hbm [shape: bf16[128,128], index: 11, kind: input, shape index: {}]
  %s12 = inlined_call_operand.vmem [shape: f32[1,128], index: 12, kind: input, shape index: {}]
  %s13 = inlined_call_operand.hbm [shape: bf16[128,128], index: 13, kind: input, shape index: {}]
  %s14 = inlined_call_operand.vmem [shape: f32[1,128], index: 14, kind: input, shape index: {}]
  %s15 = inlined_call_operand.hbm [shape: bf16[128,128], index: 15, kind: input, shape index: {}]
  %s16 = inlined_call_operand.vmem [shape: f32[1,128], index: 16, kind: input, shape index: {}]
  %s17 = inlined_call_operand.hbm [shape: f32[512,128], index: 17, kind: output, shape index: {0}]
  %s18 = inlined_call_operand.hbm [shape: f32[512,128], index: 18, kind: output, shape index: {1}]
  %19 = xla_tuple %s17, %s18
  %s20 = sld [smem:[#allocation0]]
  $region145: #{tpu_custom_call.1} parent=0
    _
  %s22 = ssub.s32 1, %s20
  %s23 = scalar_select 0, %s22, %s20
  $region1: #{tpu_custom_call.1} parent=0
    #allocation2 [shape = 'u8[131072]{0}', space=vmem, size = 0x20000, scoped, tag = 'input window, operand 0']
    #allocation3 [shape = 's32[2]{0}', space=sflag, size = 0x8, scoped, tag = 'scoped memory for tpu_custom_call.1']
    #allocation4 [shape = 's32[2]{0}', space=sflag, size = 0x8, scoped, tag = 'scoped memory for tpu_custom_call.1']
    #allocation5 [shape = 'u8[32768]{0}', space=vmem, size = 0x8000, scoped, tag = 'input window, operand 1, single buffered']
    #allocation6 [shape = 's32[1]{0}', space=sflag, size = 0x4, scoped, tag = 'scoped memory for tpu_custom_call.1']
    #allocation7 [shape = 'u8[32768]{0}', space=vmem, size = 0x8000, scoped, tag = 'input window, operand 3, single buffered']
    #allocation8 [shape = 'u8[32768]{0}', space=vmem, size = 0x8000, scoped, tag = 'input window, operand 5, single buffered']
    #allocation9 [shape = 's32[1]{0}', space=sflag, size = 0x4, scoped, tag = 'scoped memory for tpu_custom_call.1']
    #allocation10 [shape = 'u8[32768]{0}', space=vmem, size = 0x8000, scoped, tag = 'input window, operand 7, single buffered']
    #allocation11 [shape = 'u8[32768]{0}', space=vmem, size = 0x8000, scoped, tag = 'input window, operand 9, single buffered']
    #allocation12 [shape = 's32[1]{0}', space=sflag, size = 0x4, scoped, tag = 'scoped memory for tpu_custom_call.1']
    #allocation13 [shape = 'u8[32768]{0}', space=vmem, size = 0x8000, scoped, tag = 'input window, operand 11, single buffered']
    #allocation14 [shape = 'u8[32768]{0}', space=vmem, size = 0x8000, scoped, tag = 'input window, operand 13, single buffered']
    #allocation15 [shape = 's32[1]{0}', space=sflag, size = 0x4, scoped, tag = 'scoped memory for tpu_custom_call.1']
    #allocation16 [shape = 'u8[32768]{0}', space=vmem, size = 0x8000, scoped, tag = 'input window, operand 15, single buffered']
    #allocation17 [shape = 'u8[262144]{0}', space=vmem, size = 0x40000, scoped, tag = 'output window, operand 0']
    #allocation18 [shape = 'u8[262144]{0}', space=vmem, size = 0x40000, scoped, tag = 'output window, operand 1']
    #allocation19 [shape = 's32[2]{0}', space=sflag, size = 0x8, scoped, tag = 'scoped memory for tpu_custom_call.1']
    %24 = vsyncpa [#allocation3], 0
    %s25 = scalar_lea.sflag [#allocation3], 1
    %26 = vsyncpa %s25, 0
    %27 = vsyncpa [#allocation6], 0
    %28 = vsyncpa [#allocation9], 0
    %29 = vsyncpa [#allocation12], 0
    %30 = vsyncpa [#allocation15], 0
    %31 = vsyncpa [#allocation4], 0
    %s32 = scalar_lea.sflag [#allocation4], 1
    %33 = vsyncpa %s32, 0
    %34 = vsyncpa [#allocation19], 0
    %s35 = scalar_lea.sflag [#allocation19], 1
    %36 = vsyncpa %s35, 0
    loop: start=0, step=1, limit=4
    $region2: #{tpu_custom_call.1} parent=1 // loop_pre_header
      _
    $region3: #{tpu_custom_call.1} parent=1 // loop_header
      %s38 = sphi 0, %s42
      %p39 = scmp.ge.s32.totalorder %s38, 4
      %s48 = sphi 0, %s50
      %s51 = sphi 0, %s48
      %s52 = sphi 0, %s51
      %s68 = sphi 0, %s52
      %s72 = sphi 0, %s72
      %s74 = sphi 0, %s72
      %s75 = sphi 0, %s74
      %s89 = sphi 0, %s75
      %s93 = sphi 0, %s93
      %s95 = sphi 0, %s93
      %s96 = sphi 0, %s95
      %s110 = sphi 0, %s96
      %s114 = sphi 0, %s114
      %s116 = sphi 0, %s114
      %s117 = sphi 0, %s116
      %s131 = sphi 0, %s117
      %s135 = sphi 0, %s135
      %s137 = sphi 0, %s135
      %s138 = sphi 0, %s137
      %s152 = sphi 0, %s138
      %s156 = sphi 0, %s156
      %s158 = sphi 0, %s156
      %s159 = sphi 0, %s158
      %s173 = sphi 0, %s159
      %s177 = sphi 0, %s177
      %s179 = sphi 0, %s177
      %s180 = sphi 0, %s179
      %s194 = sphi 0, %s180
      %s198 = sphi 0, %s198
      %s200 = sphi 0, %s198
      %s201 = sphi 0, %s200
      %s215 = sphi 0, %s201
      %s219 = sphi 0, %s219
      %s221 = sphi 0, %s219
      %s222 = sphi 0, %s221
      %s236 = sphi 0, %s222
      %s240 = sphi 0, %s240
      %s242 = sphi 0, %s240
      %s243 = sphi 0, %s242
      %s257 = sphi 0, %s243
      %s261 = sphi 0, %s261
      %s263 = sphi 0, %s261
      %s264 = sphi 0, %s263
      %s278 = sphi 0, %s264
      %s282 = sphi 0, %s282
      %s284 = sphi 0, %s282
      %s285 = sphi 0, %s284
      %s299 = sphi 0, %s285
      %s303 = sphi 0, %s303
      %s305 = sphi 0, %s303
      %s306 = sphi 0, %s305
      %s320 = sphi 0, %s306
      %s324 = sphi 0, %s324
      %s326 = sphi 0, %s324
      %s327 = sphi 0, %s326
      %s341 = sphi 0, %s327
      %s345 = sphi 0, %s345
      %s347 = sphi 0, %s345
      %s348 = sphi 0, %s347
      %s362 = sphi 0, %s348
      %s366 = sphi 0, %s366
      %s368 = sphi 0, %s366
      %s369 = sphi 0, %s368
      %s383 = sphi 0, %s369
      %s387 = sphi 0, %s387
      %s389 = sphi 0, %s387
      %s390 = sphi 0, %s389
      %s404 = sphi 0, %s390
      %s410 = sphi 0, %s412
      %s413 = sphi 0, %s410
      %s414 = sphi 0, %s413
      %s430 = sphi 0, %s414
      %s436 = sphi 0, %s438
      %s439 = sphi 0, %s436
      %s440 = sphi 0, %s439
      %s456 = sphi 0, %s440
    $region4: #{tpu_custom_call.1} parent=1 // loop_header_branch
      %41 = sbr.rel (%p39) target = $region8
    $region5: #{tpu_custom_call.1} parent=1 // loop_body
      %s43 = ssub.s32 %s38, 1
      %s44 = ssub.s32 %s38, 2
      %s45 = sadd.s32 %s38, 1
      %s46 = ssub.s32 %s38, %s45
      %p47 = scmp.eq.s32.totalorder %s46, 0
      %s49 = sadd.s32 %s48, 1
      %s50 = scalar_select %p47, %s48, %s49
      %p53 = pneg %p47
      %p54 = scmp.eq.s32.totalorder %s38, 1
      %p55 = por %p53, %p54
      %p56 = scmp.ne.s32.totalorder %s48, %s51
      %p57 = scmp.eq.s32.totalorder %s38, 0
      %p58 = por %p56, %p57
      %p59 = scmp.ne.s32.totalorder %s48, %s51
      %p60 = scmp.eq.s32.totalorder %s43, 1
      %p61 = por %p59, %p60
      %p62 = scmp.ne.s32.totalorder %s51, %s52
      %p63 = scmp.eq.s32.totalorder %s43, 0
      %p64 = por %p62, %p63
      %p65 = scmp.ne.s32.totalorder %s51, %s52
      %p66 = scmp.eq.s32.totalorder %s44, 1
      %p67 = por %p65, %p66
      %p69 = scmp.ne.s32.totalorder %s52, %s68
      %p70 = scmp.eq.s32.totalorder %s44, 0
      %p71 = por %p69, %p70
      %s73 = sadd.s32 %s72, 1
      %p76 = scmp.eq.s32.totalorder %s38, 1
      %p77 = scmp.ne.s32.totalorder %s72, %s74
      %p78 = scmp.eq.s32.totalorder %s38, 0
      %p79 = por %p77, %p78
      %p80 = scmp.ne.s32.totalorder %s72, %s74
      %p81 = scmp.eq.s32.totalorder %s43, 1
      %p82 = por %p80, %p81
      %p83 = scmp.ne.s32.totalorder %s74, %s75
      %p84 = scmp.eq.s32.totalorder %s43, 0
      %p85 = por %p83, %p84
      %p86 = scmp.ne.s32.totalorder %s74, %s75
      %p87 = scmp.eq.s32.totalorder %s44, 1
      %p88 = por %p86, %p87
      %p90 = scmp.ne.s32.totalorder %s75, %s89
      %p91 = scmp.eq.s32.totalorder %s44, 0
      %p92 = por %p90, %p91
      %s94 = sadd.s32 %s93, 1
      %p97 = scmp.eq.s32.totalorder %s38, 1
      %p98 = scmp.ne.s32.totalorder %s93, %s95
      %p99 = scmp.eq.s32.totalorder %s38, 0
      %p100 = por %p98, %p99
      %p101 = scmp.ne.s32.totalorder %s93, %s95
      %p102 = scmp.eq.s32.totalorder %s43, 1
      %p103 = por %p101, %p102
      %p104 = scmp.ne.s32.totalorder %s95, %s96
      %p105 = scmp.eq.s32.totalorder %s43, 0
      %p106 = por %p104, %p105
      %p107 = scmp.ne.s32.totalorder %s95, %s96
      %p108 = scmp.eq.s32.totalorder %s44, 1
      %p109 = por %p107, %p108
      %p111 = scmp.ne.s32.totalorder %s96, %s110
      %p112 = scmp.eq.s32.totalorder %s44, 0
      %p113 = por %p111, %p112
      %s115 = sadd.s32 %s114, 1
      %p118 = scmp.eq.s32.totalorder %s38, 1
      %p119 = scmp.ne.s32.totalorder %s114, %s116
      %p120 = scmp.eq.s32.totalorder %s38, 0
      %p121 = por %p119, %p120
      %p122 = scmp.ne.s32.totalorder %s114, %s116
      %p123 = scmp.eq.s32.totalorder %s43, 1
      %p124 = por %p122, %p123
      %p125 = scmp.ne.s32.totalorder %s116, %s117
      %p126 = scmp.eq.s32.totalorder %s43, 0
      %p127 = por %p125, %p126
      %p128 = scmp.ne.s32.totalorder %s116, %s117
      %p129 = scmp.eq.s32.totalorder %s44, 1
      %p130 = por %p128, %p129
      %p132 = scmp.ne.s32.totalorder %s117, %s131
      %p133 = scmp.eq.s32.totalorder %s44, 0
      %p134 = por %p132, %p133
      %s136 = sadd.s32 %s135, 1
      %p139 = scmp.eq.s32.totalorder %s38, 1
      %p140 = scmp.ne.s32.totalorder %s135, %s137
      %p141 = scmp.eq.s32.totalorder %s38, 0
      %p142 = por %p140, %p141
      %p143 = scmp.ne.s32.totalorder %s135, %s137
      %p144 = scmp.eq.s32.totalorder %s43, 1
      %p145 = por %p143, %p144
      %p146 = scmp.ne.s32.totalorder %s137, %s138
      %p147 = scmp.eq.s32.totalorder %s43, 0
      %p148 = por %p146, %p147
      %p149 = scmp.ne.s32.totalorder %s137, %s138
      %p150 = scmp.eq.s32.totalorder %s44, 1
      %p151 = por %p149, %p150
      %p153 = scmp.ne.s32.totalorder %s138, %s152
      %p154 = scmp.eq.s32.totalorder %s44, 0
      %p155 = por %p153, %p154
      %s157 = sadd.s32 %s156, 1
      %p160 = scmp.eq.s32.totalorder %s38, 1
      %p161 = scmp.ne.s32.totalorder %s156, %s158
      %p162 = scmp.eq.s32.totalorder %s38, 0
      %p163 = por %p161, %p162
      %p164 = scmp.ne.s32.totalorder %s156, %s158
      %p165 = scmp.eq.s32.totalorder %s43, 1
      %p166 = por %p164, %p165
      %p167 = scmp.ne.s32.totalorder %s158, %s159
      %p168 = scmp.eq.s32.totalorder %s43, 0
      %p169 = por %p167, %p168
      %p170 = scmp.ne.s32.totalorder %s158, %s159
      %p171 = scmp.eq.s32.totalorder %s44, 1
      %p172 = por %p170, %p171
      %p174 = scmp.ne.s32.totalorder %s159, %s173
      %p175 = scmp.eq.s32.totalorder %s44, 0
      %p176 = por %p174, %p175
      %s178 = sadd.s32 %s177, 1
      %p181 = scmp.eq.s32.totalorder %s38, 1
      %p182 = scmp.ne.s32.totalorder %s177, %s179
      %p183 = scmp.eq.s32.totalorder %s38, 0
      %p184 = por %p182, %p183
      %p185 = scmp.ne.s32.totalorder %s177, %s179
      %p186 = scmp.eq.s32.totalorder %s43, 1
      %p187 = por %p185, %p186
      %p188 = scmp.ne.s32.totalorder %s179, %s180
      %p189 = scmp.eq.s32.totalorder %s43, 0
      %p190 = por %p188, %p189
      %p191 = scmp.ne.s32.totalorder %s179, %s180
      %p192 = scmp.eq.s32.totalorder %s44, 1
      %p193 = por %p191, %p192
      %p195 = scmp.ne.s32.totalorder %s180, %s194
      %p196 = scmp.eq.s32.totalorder %s44, 0
      %p197 = por %p195, %p196
      %s199 = sadd.s32 %s198, 1
      %p202 = scmp.eq.s32.totalorder %s38, 1
      %p203 = scmp.ne.s32.totalorder %s198, %s200
      %p204 = scmp.eq.s32.totalorder %s38, 0
      %p205 = por %p203, %p204
      %p206 = scmp.ne.s32.totalorder %s198, %s200
      %p207 = scmp.eq.s32.totalorder %s43, 1
      %p208 = por %p206, %p207
      %p209 = scmp.ne.s32.totalorder %s200, %s201
      %p210 = scmp.eq.s32.totalorder %s43, 0
      %p211 = por %p209, %p210
      %p212 = scmp.ne.s32.totalorder %s200, %s201
      %p213 = scmp.eq.s32.totalorder %s44, 1
      %p214 = por %p212, %p213
      %p216 = scmp.ne.s32.totalorder %s201, %s215
      %p217 = scmp.eq.s32.totalorder %s44, 0
      %p218 = por %p216, %p217
      %s220 = sadd.s32 %s219, 1
      %p223 = scmp.eq.s32.totalorder %s38, 1
      %p224 = scmp.ne.s32.totalorder %s219, %s221
      %p225 = scmp.eq.s32.totalorder %s38, 0
      %p226 = por %p224, %p225
      %p227 = scmp.ne.s32.totalorder %s219, %s221
      %p228 = scmp.eq.s32.totalorder %s43, 1
      %p229 = por %p227, %p228
      %p230 = scmp.ne.s32.totalorder %s221, %s222
      %p231 = scmp.eq.s32.totalorder %s43, 0
      %p232 = por %p230, %p231
      %p233 = scmp.ne.s32.totalorder %s221, %s222
      %p234 = scmp.eq.s32.totalorder %s44, 1
      %p235 = por %p233, %p234
      %p237 = scmp.ne.s32.totalorder %s222, %s236
      %p238 = scmp.eq.s32.totalorder %s44, 0
      %p239 = por %p237, %p238
      %s241 = sadd.s32 %s240, 1
      %p244 = scmp.eq.s32.totalorder %s38, 1
      %p245 = scmp.ne.s32.totalorder %s240, %s242
      %p246 = scmp.eq.s32.totalorder %s38, 0
      %p247 = por %p245, %p246
      %p248 = scmp.ne.s32.totalorder %s240, %s242
      %p249 = scmp.eq.s32.totalorder %s43, 1
      %p250 = por %p248, %p249
      %p251 = scmp.ne.s32.totalorder %s242, %s243
      %p252 = scmp.eq.s32.totalorder %s43, 0
      %p253 = por %p251, %p252
      %p254 = scmp.ne.s32.totalorder %s242, %s243
      %p255 = scmp.eq.s32.totalorder %s44, 1
      %p256 = por %p254, %p255
      %p258 = scmp.ne.s32.totalorder %s243, %s257
      %p259 = scmp.eq.s32.totalorder %s44, 0
      %p260 = por %p258, %p259
      %s262 = sadd.s32 %s261, 1
      %p265 = scmp.eq.s32.totalorder %s38, 1
      %p266 = scmp.ne.s32.totalorder %s261, %s263
      %p267 = scmp.eq.s32.totalorder %s38, 0
      %p268 = por %p266, %p267
      %p269 = scmp.ne.s32.totalorder %s261, %s263
      %p270 = scmp.eq.s32.totalorder %s43, 1
      %p271 = por %p269, %p270
      %p272 = scmp.ne.s32.totalorder %s263, %s264
      %p273 = scmp.eq.s32.totalorder %s43, 0
      %p274 = por %p272, %p273
      %p275 = scmp.ne.s32.totalorder %s263, %s264
      %p276 = scmp.eq.s32.totalorder %s44, 1
      %p277 = por %p275, %p276
      %p279 = scmp.ne.s32.totalorder %s264, %s278
      %p280 = scmp.eq.s32.totalorder %s44, 0
      %p281 = por %p279, %p280
      %s283 = sadd.s32 %s282, 1
      %p286 = scmp.eq.s32.totalorder %s38, 1
      %p287 = scmp.ne.s32.totalorder %s282, %s284
      %p288 = scmp.eq.s32.totalorder %s38, 0
      %p289 = por %p287, %p288
      %p290 = scmp.ne.s32.totalorder %s282, %s284
      %p291 = scmp.eq.s32.totalorder %s43, 1
      %p292 = por %p290, %p291
      %p293 = scmp.ne.s32.totalorder %s284, %s285
      %p294 = scmp.eq.s32.totalorder %s43, 0
      %p295 = por %p293, %p294
      %p296 = scmp.ne.s32.totalorder %s284, %s285
      %p297 = scmp.eq.s32.totalorder %s44, 1
      %p298 = por %p296, %p297
      %p300 = scmp.ne.s32.totalorder %s285, %s299
      %p301 = scmp.eq.s32.totalorder %s44, 0
      %p302 = por %p300, %p301
      %s304 = sadd.s32 %s303, 1
      %p307 = scmp.eq.s32.totalorder %s38, 1
      %p308 = scmp.ne.s32.totalorder %s303, %s305
      %p309 = scmp.eq.s32.totalorder %s38, 0
      %p310 = por %p308, %p309
      %p311 = scmp.ne.s32.totalorder %s303, %s305
      %p312 = scmp.eq.s32.totalorder %s43, 1
      %p313 = por %p311, %p312
      %p314 = scmp.ne.s32.totalorder %s305, %s306
      %p315 = scmp.eq.s32.totalorder %s43, 0
      %p316 = por %p314, %p315
      %p317 = scmp.ne.s32.totalorder %s305, %s306
      %p318 = scmp.eq.s32.totalorder %s44, 1
      %p319 = por %p317, %p318
      %p321 = scmp.ne.s32.totalorder %s306, %s320
      %p322 = scmp.eq.s32.totalorder %s44, 0
      %p323 = por %p321, %p322
      %s325 = sadd.s32 %s324, 1
      %p328 = scmp.eq.s32.totalorder %s38, 1
      %p329 = scmp.ne.s32.totalorder %s324, %s326
      %p330 = scmp.eq.s32.totalorder %s38, 0
      %p331 = por %p329, %p330
      %p332 = scmp.ne.s32.totalorder %s324, %s326
      %p333 = scmp.eq.s32.totalorder %s43, 1
      %p334 = por %p332, %p333
      %p335 = scmp.ne.s32.totalorder %s326, %s327
      %p336 = scmp.eq.s32.totalorder %s43, 0
      %p337 = por %p335, %p336
      %p338 = scmp.ne.s32.totalorder %s326, %s327
      %p339 = scmp.eq.s32.totalorder %s44, 1
      %p340 = por %p338, %p339
      %p342 = scmp.ne.s32.totalorder %s327, %s341
      %p343 = scmp.eq.s32.totalorder %s44, 0
      %p344 = por %p342, %p343
      %s346 = sadd.s32 %s345, 1
      %p349 = scmp.eq.s32.totalorder %s38, 1
      %p350 = scmp.ne.s32.totalorder %s345, %s347
      %p351 = scmp.eq.s32.totalorder %s38, 0
      %p352 = por %p350, %p351
      %p353 = scmp.ne.s32.totalorder %s345, %s347
      %p354 = scmp.eq.s32.totalorder %s43, 1
      %p355 = por %p353, %p354
      %p356 = scmp.ne.s32.totalorder %s347, %s348
      %p357 = scmp.eq.s32.totalorder %s43, 0
      %p358 = por %p356, %p357
      %p359 = scmp.ne.s32.totalorder %s347, %s348
      %p360 = scmp.eq.s32.totalorder %s44, 1
      %p361 = por %p359, %p360
      %p363 = scmp.ne.s32.totalorder %s348, %s362
      %p364 = scmp.eq.s32.totalorder %s44, 0
      %p365 = por %p363, %p364
      %s367 = sadd.s32 %s366, 1
      %p370 = scmp.eq.s32.totalorder %s38, 1
      %p371 = scmp.ne.s32.totalorder %s366, %s368
      %p372 = scmp.eq.s32.totalorder %s38, 0
      %p373 = por %p371, %p372
      %p374 = scmp.ne.s32.totalorder %s366, %s368
      %p375 = scmp.eq.s32.totalorder %s43, 1
      %p376 = por %p374, %p375
      %p377 = scmp.ne.s32.totalorder %s368, %s369
      %p378 = scmp.eq.s32.totalorder %s43, 0
      %p379 = por %p377, %p378
      %p380 = scmp.ne.s32.totalorder %s368, %s369
      %p381 = scmp.eq.s32.totalorder %s44, 1
      %p382 = por %p380, %p381
      %p384 = scmp.ne.s32.totalorder %s369, %s383
      %p385 = scmp.eq.s32.totalorder %s44, 0
      %p386 = por %p384, %p385
      %s388 = sadd.s32 %s387, 1
      %p391 = scmp.eq.s32.totalorder %s38, 1
      %p392 = scmp.ne.s32.totalorder %s387, %s389
      %p393 = scmp.eq.s32.totalorder %s38, 0
      %p394 = por %p392, %p393
      %p395 = scmp.ne.s32.totalorder %s387, %s389
      %p396 = scmp.eq.s32.totalorder %s43, 1
      %p397 = por %p395, %p396
      %p398 = scmp.ne.s32.totalorder %s389, %s390
      %p399 = scmp.eq.s32.totalorder %s43, 0
      %p400 = por %p398, %p399
      %p401 = scmp.ne.s32.totalorder %s389, %s390
      %p402 = scmp.eq.s32.totalorder %s44, 1
      %p403 = por %p401, %p402
      %p405 = scmp.ne.s32.totalorder %s390, %s404
      %p406 = scmp.eq.s32.totalorder %s44, 0
      %p407 = por %p405, %p406
      %s408 = ssub.s32 %s38, %s45
      %p409 = scmp.eq.s32.totalorder %s408, 0
      %s411 = sadd.s32 %s410, 1
      %s412 = scalar_select %p409, %s410, %s411
      %p415 = pneg %p409
      %p416 = scmp.eq.s32.totalorder %s38, 1
      %p417 = por %p415, %p416
      %p418 = scmp.ne.s32.totalorder %s410, %s413
      %p419 = scmp.eq.s32.totalorder %s38, 0
      %p420 = por %p418, %p419
      %p421 = scmp.ne.s32.totalorder %s410, %s413
      %p422 = scmp.eq.s32.totalorder %s43, 1
      %p423 = por %p421, %p422
      %p424 = scmp.ne.s32.totalorder %s413, %s414
      %p425 = scmp.eq.s32.totalorder %s43, 0
      %p426 = por %p424, %p425
      %p427 = scmp.ne.s32.totalorder %s413, %s414
      %p428 = scmp.eq.s32.totalorder %s44, 1
      %p429 = por %p427, %p428
      %p431 = scmp.ne.s32.totalorder %s414, %s430
      %p432 = scmp.eq.s32.totalorder %s44, 0
      %p433 = por %p431, %p432
      %s434 = ssub.s32 %s38, %s45
      %p435 = scmp.eq.s32.totalorder %s434, 0
      %s437 = sadd.s32 %s436, 1
      %s438 = scalar_select %p435, %s436, %s437
      %p441 = pneg %p435
      %p442 = scmp.eq.s32.totalorder %s38, 1
      %p443 = por %p441, %p442
      %p444 = scmp.ne.s32.totalorder %s436, %s439
      %p445 = scmp.eq.s32.totalorder %s38, 0
      %p446 = por %p444, %p445
      %p447 = scmp.ne.s32.totalorder %s436, %s439
      %p448 = scmp.eq.s32.totalorder %s43, 1
      %p449 = por %p447, %p448
      %p450 = scmp.ne.s32.totalorder %s439, %s440
      %p451 = scmp.eq.s32.totalorder %s43, 0
      %p452 = por %p450, %p451
      %p453 = scmp.ne.s32.totalorder %s439, %s440
      %p454 = scmp.eq.s32.totalorder %s44, 1
      %p455 = por %p453, %p454
      %p457 = scmp.ne.s32.totalorder %s440, %s456
      %p458 = scmp.eq.s32.totalorder %s44, 0
      %p459 = por %p457, %p458
      %p460 = scmp.le.s32.totalorder 1, %s38
      %p461 = scmp.lt.s32.totalorder %s38, 3
      %p462 = pnand %p460, %p461
      %p463 = pneg %p462
      // Predicated region
      $region9: #{tpu_custom_call.1} parent=5 // pred_check
        _
      $region10: #{tpu_custom_call.1} parent=5 // pred_check_branch
        %465 = sbr.rel (%p462) target = $region12
      $region11: #{tpu_custom_call.1} parent=5 // pred_region
        %s466 = ssub.s32 %s38, 1
        // Predicated region
        $region13: #{tpu_custom_call.1} parent=11 // pred_check
          %p467 = pneg %p85
        $region14: #{tpu_custom_call.1} parent=11 // pred_check_branch
          %469 = sbr.rel (%p467) target = $region16
        $region15: #{tpu_custom_call.1} parent=11 // pred_region
          %471 = vsyncadd [#allocation6], 0
          %s472 = sshll.u32 %s1, 4
          %s473 = int_to_ptr.hbm [resolvable:$true] %s472
          %s474 = sshll.u32 [#allocation5], 4
          %s475 = int_to_ptr.vmem [resolvable:$true] %s474
          %480 = dma.hbm_to_vmem [thread:$0]  %s473, 1024, %s475, [#allocation6], 64, 64, 4
        $region16: #{tpu_custom_call.1} parent=11 // pred_fallthru
          _
        // Predicated region
        $region17: #{tpu_custom_call.1} parent=11 // pred_check
          %p481 = pneg %p106
        $region18: #{tpu_custom_call.1} parent=11 // pred_check_branch
          %483 = sbr.rel (%p481) target = $region20
        $region19: #{tpu_custom_call.1} parent=11 // pred_region
          _
        $region20: #{tpu_custom_call.1} parent=11 // pred_fallthru
          _
        // Predicated region
        $region21: #{tpu_custom_call.1} parent=11 // pred_check
          %p484 = pneg %p127
        $region22: #{tpu_custom_call.1} parent=11 // pred_check_branch
          %486 = sbr.rel (%p484) target = $region24
        $region23: #{tpu_custom_call.1} parent=11 // pred_region
          %488 = vsyncadd [#allocation6], 0
          %s489 = sshll.u32 %s3, 4
          %s490 = int_to_ptr.hbm [resolvable:$true] %s489
          %s491 = sshll.u32 [#allocation7], 4
          %s492 = int_to_ptr.vmem [resolvable:$true] %s491
          %497 = dma.hbm_to_vmem [thread:$0]  %s490, 1024, %s492, [#allocation6], 64, 64, 4
        $region24: #{tpu_custom_call.1} parent=11 // pred_fallthru
          _
        // Predicated region
        $region25: #{tpu_custom_call.1} parent=11 // pred_check
          %p498 = pneg %p148
        $region26: #{tpu_custom_call.1} parent=11 // pred_check_branch
          %500 = sbr.rel (%p498) target = $region28
        $region27: #{tpu_custom_call.1} parent=11 // pred_region
          _
        $region28: #{tpu_custom_call.1} parent=11 // pred_fallthru
          _
        // Predicated region
        $region29: #{tpu_custom_call.1} parent=11 // pred_check
          %p501 = pneg %p169
        $region30: #{tpu_custom_call.1} parent=11 // pred_check_branch
          %503 = sbr.rel (%p501) target = $region32
        $region31: #{tpu_custom_call.1} parent=11 // pred_region
          %505 = vsyncadd [#allocation9], 0
          %s506 = sshll.u32 %s5, 4
          %s507 = int_to_ptr.hbm [resolvable:$true] %s506
          %s508 = sshll.u32 [#allocation8], 4
          %s509 = int_to_ptr.vmem [resolvable:$true] %s508
          %514 = dma.hbm_to_vmem [thread:$0]  %s507, 1024, %s509, [#allocation9], 64, 64, 4
        $region32: #{tpu_custom_call.1} parent=11 // pred_fallthru
          _
        // Predicated region
        $region33: #{tpu_custom_call.1} parent=11 // pred_check
          %p515 = pneg %p190
        $region34: #{tpu_custom_call.1} parent=11 // pred_check_branch
          %517 = sbr.rel (%p515) target = $region36
        $region35: #{tpu_custom_call.1} parent=11 // pred_region
          _
        $region36: #{tpu_custom_call.1} parent=11 // pred_fallthru
          _
        // Predicated region
        $region37: #{tpu_custom_call.1} parent=11 // pred_check
          %p518 = pneg %p211
        $region38: #{tpu_custom_call.1} parent=11 // pred_check_branch
          %520 = sbr.rel (%p518) target = $region40
        $region39: #{tpu_custom_call.1} parent=11 // pred_region
          %522 = vsyncadd [#allocation9], 0
          %s523 = sshll.u32 %s7, 4
          %s524 = int_to_ptr.hbm [resolvable:$true] %s523
          %s525 = sshll.u32 [#allocation10], 4
          %s526 = int_to_ptr.vmem [resolvable:$true] %s525
          %531 = dma.hbm_to_vmem [thread:$0]  %s524, 1024, %s526, [#allocation9], 64, 64, 4
        $region40: #{tpu_custom_call.1} parent=11 // pred_fallthru
          _
        // Predicated region
        $region41: #{tpu_custom_call.1} parent=11 // pred_check
          %p532 = pneg %p232
        $region42: #{tpu_custom_call.1} parent=11 // pred_check_branch
          %534 = sbr.rel (%p532) target = $region44
        $region43: #{tpu_custom_call.1} parent=11 // pred_region
          _
        $region44: #{tpu_custom_call.1} parent=11 // pred_fallthru
          _
        // Predicated region
        $region45: #{tpu_custom_call.1} parent=11 // pred_check
          %p535 = pneg %p253
        $region46: #{tpu_custom_call.1} parent=11 // pred_check_branch
          %537 = sbr.rel (%p535) target = $region48
        $region47: #{tpu_custom_call.1} parent=11 // pred_region
          %539 = vsyncadd [#allocation12], 0
          %s540 = sshll.u32 %s9, 4
          %s541 = int_to_ptr.hbm [resolvable:$true] %s540
          %s542 = sshll.u32 [#allocation11], 4
          %s543 = int_to_ptr.vmem [resolvable:$true] %s542
          %548 = dma.hbm_to_vmem [thread:$0]  %s541, 1024, %s543, [#allocation12], 64, 64, 4
        $region48: #{tpu_custom_call.1} parent=11 // pred_fallthru
          _
        // Predicated region
        $region49: #{tpu_custom_call.1} parent=11 // pred_check
          %p549 = pneg %p274
        $region50: #{tpu_custom_call.1} parent=11 // pred_check_branch
          %551 = sbr.rel (%p549) target = $region52
        $region51: #{tpu_custom_call.1} parent=11 // pred_region
          _
        $region52: #{tpu_custom_call.1} parent=11 // pred_fallthru
          _
        // Predicated region
        $region53: #{tpu_custom_call.1} parent=11 // pred_check
          %p552 = pneg %p295
        $region54: #{tpu_custom_call.1} parent=11 // pred_check_branch
          %554 = sbr.rel (%p552) target = $region56
        $region55: #{tpu_custom_call.1} parent=11 // pred_region
          %556 = vsyncadd [#allocation12], 0
          %s557 = sshll.u32 %s11, 4
          %s558 = int_to_ptr.hbm [resolvable:$true] %s557
          %s559 = sshll.u32 [#allocation13], 4
          %s560 = int_to_ptr.vmem [resolvable:$true] %s559
          %565 = dma.hbm_to_vmem [thread:$0]  %s558, 1024, %s560, [#allocation12], 64, 64, 4
        $region56: #{tpu_custom_call.1} parent=11 // pred_fallthru
          _
        // Predicated region
        $region57: #{tpu_custom_call.1} parent=11 // pred_check
          %p566 = pneg %p316
        $region58: #{tpu_custom_call.1} parent=11 // pred_check_branch
          %568 = sbr.rel (%p566) target = $region60
        $region59: #{tpu_custom_call.1} parent=11 // pred_region
          _
        $region60: #{tpu_custom_call.1} parent=11 // pred_fallthru
          _
        // Predicated region
        $region61: #{tpu_custom_call.1} parent=11 // pred_check
          %p569 = pneg %p337
        $region62: #{tpu_custom_call.1} parent=11 // pred_check_branch
          %571 = sbr.rel (%p569) target = $region64
        $region63: #{tpu_custom_call.1} parent=11 // pred_region
          %573 = vsyncadd [#allocation15], 0
          %s574 = sshll.u32 %s13, 4
          %s575 = int_to_ptr.hbm [resolvable:$true] %s574
          %s576 = sshll.u32 [#allocation14], 4
          %s577 = int_to_ptr.vmem [resolvable:$true] %s576
          %582 = dma.hbm_to_vmem [thread:$0]  %s575, 1024, %s577, [#allocation15], 64, 64, 4
        $region64: #{tpu_custom_call.1} parent=11 // pred_fallthru
          _
        // Predicated region
        $region65: #{tpu_custom_call.1} parent=11 // pred_check
          %p583 = pneg %p358
        $region66: #{tpu_custom_call.1} parent=11 // pred_check_branch
          %585 = sbr.rel (%p583) target = $region68
        $region67: #{tpu_custom_call.1} parent=11 // pred_region
          _
        $region68: #{tpu_custom_call.1} parent=11 // pred_fallthru
          _
        // Predicated region
        $region69: #{tpu_custom_call.1} parent=11 // pred_check
          %p586 = pneg %p379
        $region70: #{tpu_custom_call.1} parent=11 // pred_check_branch
          %588 = sbr.rel (%p586) target = $region72
        $region71: #{tpu_custom_call.1} parent=11 // pred_region
          %590 = vsyncadd [#allocation15], 0
          %s591 = sshll.u32 %s15, 4
          %s592 = int_to_ptr.hbm [resolvable:$true] %s591
          %s593 = sshll.u32 [#allocation16], 4
          %s594 = int_to_ptr.vmem [resolvable:$true] %s593
          %599 = dma.hbm_to_vmem [thread:$0]  %s592, 1024, %s594, [#allocation15], 64, 64, 4
        $region72: #{tpu_custom_call.1} parent=11 // pred_fallthru
          _
        // Predicated region
        $region73: #{tpu_custom_call.1} parent=11 // pred_check
          %p600 = pneg %p400
        $region74: #{tpu_custom_call.1} parent=11 // pred_check_branch
          %602 = sbr.rel (%p600) target = $region76
        $region75: #{tpu_custom_call.1} parent=11 // pred_region
          _
        $region76: #{tpu_custom_call.1} parent=11 // pred_fallthru
          _
      $region12: #{tpu_custom_call.1} parent=5 // pred_fallthru
        _
      %p603 = scmp.lt.s32.totalorder %s38, 2
      // Predicated region
      $region77: #{tpu_custom_call.1} parent=5 // pred_check
        %p604 = pneg %p603
      $region78: #{tpu_custom_call.1} parent=5 // pred_check_branch
        %606 = sbr.rel (%p604) target = $region80
      $region79: #{tpu_custom_call.1} parent=5 // pred_region
        // Predicated region
        $region81: #{tpu_custom_call.1} parent=79 // pred_check
          %p607 = pneg %p58
        $region82: #{tpu_custom_call.1} parent=79 // pred_check_branch
          %609 = sbr.rel (%p607) target = $region84
        $region83: #{tpu_custom_call.1} parent=79 // pred_region
          %s610 = sand.u32 %s48, 1
          %s611 = scalar_lea.sflag [#allocation3], %s610
          %s612 = sand.u32 %s48, 1
          %s613 = smul.addr %s612, 128
          %s614 = scalar_lea.vmem [#allocation2], %s613
          %s615 = smul.u32 32, %s38
          %617 = vsyncadd %s611, 0
          %s618 = smul.addr %s615, 4
          %s619 = scalar_lea.hbm %s0, %s618
          %s620 = sshll.u32 %s619, 4
          %s621 = int_to_ptr.hbm [resolvable:$true] %s620
          %s622 = sshll.u32 %s614, 4
          %s623 = int_to_ptr.vmem [resolvable:$true] %s622
          %628 = dma.hbm_to_vmem [thread:$0]  %s621, 2048, %s623, %s611, 64, 64, 4
        $region84: #{tpu_custom_call.1} parent=79 // pred_fallthru
          _
      $region80: #{tpu_custom_call.1} parent=5 // pred_fallthru
        _
      %p629 = scmp.le.s32.totalorder 1, %s38
      %p630 = scmp.lt.s32.totalorder %s38, 3
      %p631 = pnand %p629, %p630
      %p632 = pneg %p631
      // Predicated region
      $region85: #{tpu_custom_call.1} parent=5 // pred_check
        _
      $region86: #{tpu_custom_call.1} parent=5 // pred_check_branch
        %634 = sbr.rel (%p631) target = $region88
      $region87: #{tpu_custom_call.1} parent=5 // pred_region
        %s635 = ssub.s32 %s38, 1
        %s636 = sand.u32 %s51, 1
        %s637 = scalar_lea.sflag [#allocation3], %s636
        %s638 = sand.u32 %s51, 1
        %s639 = smul.addr %s638, 128
        %s640 = scalar_lea.vmem [#allocation2], %s639
        // Predicated region
        $region89: #{tpu_custom_call.1} parent=87 // pred_check
          %p641 = pneg %p64
        $region90: #{tpu_custom_call.1} parent=87 // pred_check_branch
          %643 = sbr.rel (%p641) target = $region92
        $region91: #{tpu_custom_call.1} parent=87 // pred_region
          %645 = dma.done %s637, 2048
        $region92: #{tpu_custom_call.1} parent=87 // pred_fallthru
          _
        // Predicated region
        $region93: #{tpu_custom_call.1} parent=87 // pred_check
          %p646 = pneg %p85
        $region94: #{tpu_custom_call.1} parent=87 // pred_check_branch
          %648 = sbr.rel (%p646) target = $region96
        $region95: #{tpu_custom_call.1} parent=87 // pred_region
          %650 = dma.done [#allocation6], 1024
        $region96: #{tpu_custom_call.1} parent=87 // pred_fallthru
          _
        // Predicated region
        $region97: #{tpu_custom_call.1} parent=87 // pred_check
          %p651 = pneg %p127
        $region98: #{tpu_custom_call.1} parent=87 // pred_check_branch
          %653 = sbr.rel (%p651) target = $region100
        $region99: #{tpu_custom_call.1} parent=87 // pred_region
          %655 = dma.done [#allocation6], 1024
        $region100: #{tpu_custom_call.1} parent=87 // pred_fallthru
          _
        // Predicated region
        $region101: #{tpu_custom_call.1} parent=87 // pred_check
          %p656 = pneg %p169
        $region102: #{tpu_custom_call.1} parent=87 // pred_check_branch
          %658 = sbr.rel (%p656) target = $region104
        $region103: #{tpu_custom_call.1} parent=87 // pred_region
          %660 = dma.done [#allocation9], 1024
        $region104: #{tpu_custom_call.1} parent=87 // pred_fallthru
          _
        // Predicated region
        $region105: #{tpu_custom_call.1} parent=87 // pred_check
          %p661 = pneg %p211
        $region106: #{tpu_custom_call.1} parent=87 // pred_check_branch
          %663 = sbr.rel (%p661) target = $region108
        $region107: #{tpu_custom_call.1} parent=87 // pred_region
          %665 = dma.done [#allocation9], 1024
        $region108: #{tpu_custom_call.1} parent=87 // pred_fallthru
          _
        // Predicated region
        $region109: #{tpu_custom_call.1} parent=87 // pred_check
          %p666 = pneg %p253
        $region110: #{tpu_custom_call.1} parent=87 // pred_check_branch
          %668 = sbr.rel (%p666) target = $region112
        $region111: #{tpu_custom_call.1} parent=87 // pred_region
          %670 = dma.done [#allocation12], 1024
        $region112: #{tpu_custom_call.1} parent=87 // pred_fallthru
          _
        // Predicated region
        $region113: #{tpu_custom_call.1} parent=87 // pred_check
          %p671 = pneg %p295
        $region114: #{tpu_custom_call.1} parent=87 // pred_check_branch
          %673 = sbr.rel (%p671) target = $region116
        $region115: #{tpu_custom_call.1} parent=87 // pred_region
          %675 = dma.done [#allocation12], 1024
        $region116: #{tpu_custom_call.1} parent=87 // pred_fallthru
          _
        // Predicated region
        $region117: #{tpu_custom_call.1} parent=87 // pred_check
          %p676 = pneg %p337
        $region118: #{tpu_custom_call.1} parent=87 // pred_check_branch
          %678 = sbr.rel (%p676) target = $region120
        $region119: #{tpu_custom_call.1} parent=87 // pred_region
          %680 = dma.done [#allocation15], 1024
        $region120: #{tpu_custom_call.1} parent=87 // pred_fallthru
          _
        // Predicated region
        $region121: #{tpu_custom_call.1} parent=87 // pred_check
          %p681 = pneg %p379
        $region122: #{tpu_custom_call.1} parent=87 // pred_check_branch
          %683 = sbr.rel (%p681) target = $region124
        $region123: #{tpu_custom_call.1} parent=87 // pred_region
          %685 = dma.done [#allocation15], 1024
        $region124: #{tpu_custom_call.1} parent=87 // pred_fallthru
          _
        %s686 = sand.u32 %s51, 1
        %s687 = scalar_lea.sflag [#allocation3], %s686
        %s688 = sand.u32 %s51, 1
        %s689 = smul.addr %s688, 128
        %s690 = scalar_lea.vmem [#allocation2], %s689
        %p691 = pneg %p64
        %p692 = pneg %p61
        %p693 = pneg %p85
        %p694 = pneg %p82
        %p695 = pneg %p106
        %p696 = pneg %p103
        %p697 = pneg %p127
        %p698 = pneg %p124
        %p699 = pneg %p148
        %p700 = pneg %p145
        %p701 = pneg %p169
        %p702 = pneg %p166
        %p703 = pneg %p190
        %p704 = pneg %p187
        %p705 = pneg %p211
        %p706 = pneg %p208
        %p707 = pneg %p232
        %p708 = pneg %p229
        %p709 = pneg %p253
        %p710 = pneg %p250
        %p711 = pneg %p274
        %p712 = pneg %p271
        %p713 = pneg %p295
        %p714 = pneg %p292
        %p715 = pneg %p316
        %p716 = pneg %p313
        %p717 = pneg %p337
        %p718 = pneg %p334
        %p719 = pneg %p358
        %p720 = pneg %p355
        %p721 = pneg %p379
        %p722 = pneg %p376
        %p723 = pneg %p400
        %p724 = pneg %p397
        %p725 = pneg %p426
        %p726 = pneg %p423
        %s727 = sand.u32 %s413, 1
        %s728 = scalar_lea.sflag [#allocation4], %s727
        %s729 = sand.u32 %s413, 1
        %s730 = smul.addr %s729, 256
        %s731 = scalar_lea.vmem [#allocation17], %s730
        %p732 = pneg %p452
        %p733 = pneg %p449
        %s734 = sand.u32 %s439, 1
        %s735 = scalar_lea.sflag [#allocation19], %s734
        %s736 = sand.u32 %s439, 1
        %s737 = smul.addr %s736, 256
        %s738 = scalar_lea.vmem [#allocation18], %s737
        %s739 = smul.u32 32, %s43
        %s740 = smul.u32 32, %s43
        %s741 = smul.u32 32, %s43
        %v742 = vld [vmem:[%s640] sm:$0xf]
        %v743 = vld [vmem:[%s640 + $0x4] sm:$0xf]
        %v744 = vld [vmem:[%s640 + $0x8] sm:$0xf]
        %v745 = vld [vmem:[%s640 + $0xc] sm:$0xf]
        %v746 = vld [vmem:[%s640 + $0x10] sm:$0xf]
        %v747 = vld [vmem:[%s640 + $0x14] sm:$0xf]
        %v748 = vld [vmem:[%s640 + $0x18] sm:$0xf]
        %v749 = vld [vmem:[%s640 + $0x1c] sm:$0xf]
        %v750 = vld [vmem:[%s640 + $0x20] sm:$0xf]
        %v751 = vld [vmem:[%s640 + $0x24] sm:$0xf]
        %v752 = vld [vmem:[%s640 + $0x28] sm:$0xf]
        %v753 = vld [vmem:[%s640 + $0x2c] sm:$0xf]
        %v754 = vld [vmem:[%s640 + $0x30] sm:$0xf]
        %v755 = vld [vmem:[%s640 + $0x34] sm:$0xf]
        %v756 = vld [vmem:[%s640 + $0x38] sm:$0xf]
        %v757 = vld [vmem:[%s640 + $0x3c] sm:$0xf]
        %v758 = vld [vmem:[%s640 + $0x40] sm:$0xf]
        %v759 = vld [vmem:[%s640 + $0x44] sm:$0xf]
        %v760 = vld [vmem:[%s640 + $0x48] sm:$0xf]
        %v761 = vld [vmem:[%s640 + $0x4c] sm:$0xf]
        %v762 = vld [vmem:[%s640 + $0x50] sm:$0xf]
        %v763 = vld [vmem:[%s640 + $0x54] sm:$0xf]
        %v764 = vld [vmem:[%s640 + $0x58] sm:$0xf]
        %v765 = vld [vmem:[%s640 + $0x5c] sm:$0xf]
        %v766 = vld [vmem:[%s640 + $0x60] sm:$0xf]
        %v767 = vld [vmem:[%s640 + $0x64] sm:$0xf]
        %v768 = vld [vmem:[%s640 + $0x68] sm:$0xf]
        %v769 = vld [vmem:[%s640 + $0x6c] sm:$0xf]
        %v770 = vld [vmem:[%s640 + $0x70] sm:$0xf]
        %v771 = vld [vmem:[%s640 + $0x74] sm:$0xf]
        %v772 = vld [vmem:[%s640 + $0x78] sm:$0xf]
        %v773 = vld [vmem:[%s640 + $0x7c] sm:$0xf]
        %v774 = vld [vmem:[#allocation5] sm:$0xf]
        %v775 = vld [vmem:[#allocation5 + $0x4] sm:$0xf]
        %v776 = vld [vmem:[#allocation5 + $0x8] sm:$0xf]
        %v777 = vld [vmem:[#allocation5 + $0xc] sm:$0xf]
        %v778 = vld [vmem:[#allocation5 + $0x10] sm:$0xf]
        %v779 = vld [vmem:[#allocation5 + $0x14] sm:$0xf]
        %v780 = vld [vmem:[#allocation5 + $0x18] sm:$0xf]
        %v781 = vld [vmem:[#allocation5 + $0x1c] sm:$0xf]
        %v782 = vld [vmem:[#allocation5 + $0x20] sm:$0xf]
        %v783 = vld [vmem:[#allocation5 + $0x24] sm:$0xf]
        %v784 = vld [vmem:[#allocation5 + $0x28] sm:$0xf]
        %v785 = vld [vmem:[#allocation5 + $0x2c] sm:$0xf]
        %v786 = vld [vmem:[#allocation5 + $0x30] sm:$0xf]
        %v787 = vld [vmem:[#allocation5 + $0x34] sm:$0xf]
        %v788 = vld [vmem:[#allocation5 + $0x38] sm:$0xf]
        %v789 = vld [vmem:[#allocation5 + $0x3c] sm:$0xf]
        %v790 = vld [vmem:[%s2] sm:$0x1]
        %v792 = vperm.slane %v790, 0
        %v826 = vunpack.c.l.b16 %v742
        %v827 = vunpack.c.l.b16 %v743
        %v828 = vunpack.c.l.b16 %v744
        %v829 = vunpack.c.l.b16 %v745
        %v830 = vunpack.c.l.b16 %v746
        %v831 = vunpack.c.l.b16 %v747
        %v832 = vunpack.c.l.b16 %v748
        %v833 = vunpack.c.l.b16 %v749
        %v834 = vunpack.c.l.b16 %v750
        %v835 = vunpack.c.l.b16 %v751
        %v836 = vunpack.c.l.b16 %v752
        %v837 = vunpack.c.l.b16 %v753
        %v838 = vunpack.c.l.b16 %v754
        %v839 = vunpack.c.l.b16 %v755
        %v840 = vunpack.c.l.b16 %v756
        %v841 = vunpack.c.l.b16 %v757
        %v842 = vunpack.c.l.b16 %v758
        %v843 = vunpack.c.l.b16 %v759
        %v844 = vunpack.c.l.b16 %v760
        %v845 = vunpack.c.l.b16 %v761
        %v846 = vunpack.c.l.b16 %v762
        %v847 = vunpack.c.l.b16 %v763
        %v848 = vunpack.c.l.b16 %v764
        %v849 = vunpack.c.l.b16 %v765
        %v850 = vunpack.c.l.b16 %v766
        %v851 = vunpack.c.l.b16 %v767
        %v852 = vunpack.c.l.b16 %v768
        %v853 = vunpack.c.l.b16 %v769
        %v854 = vunpack.c.l.b16 %v770
        %v855 = vunpack.c.l.b16 %v771
        %v856 = vunpack.c.l.b16 %v772
        %v857 = vunpack.c.l.b16 %v773
        %v858 = vpack.c.b16 %v827, %v826
        %v859 = vpack.c.b16 %v829, %v828
        %v860 = vpack.c.b16 %v831, %v830
        %v861 = vpack.c.b16 %v833, %v832
        %v862 = vpack.c.b16 %v835, %v834
        %v863 = vpack.c.b16 %v837, %v836
        %v864 = vpack.c.b16 %v839, %v838
        %v865 = vpack.c.b16 %v841, %v840
        %v866 = vpack.c.b16 %v843, %v842
        %v867 = vpack.c.b16 %v845, %v844
        %v868 = vpack.c.b16 %v847, %v846
        %v869 = vpack.c.b16 %v849, %v848
        %v870 = vpack.c.b16 %v851, %v850
        %v871 = vpack.c.b16 %v853, %v852
        %v872 = vpack.c.b16 %v855, %v854
        %v873 = vpack.c.b16 %v857, %v856
        %v906 = vunpack.c.l.b16 %v774
        %v907 = vunpack.c.l.b16 %v775
        %v908 = vunpack.c.l.b16 %v776
        %v909 = vunpack.c.l.b16 %v777
        %v910 = vunpack.c.l.b16 %v778
        %v911 = vunpack.c.l.b16 %v779
        %v912 = vunpack.c.l.b16 %v780
        %v913 = vunpack.c.l.b16 %v781
        %v914 = vunpack.c.l.b16 %v782
        %v915 = vunpack.c.l.b16 %v783
        %v916 = vunpack.c.l.b16 %v784
        %v917 = vunpack.c.l.b16 %v785
        %v918 = vunpack.c.l.b16 %v786
        %v919 = vunpack.c.l.b16 %v787
        %v920 = vunpack.c.l.b16 %v788
        %v921 = vunpack.c.l.b16 %v789
        %v922 = vpack.c.b16 %v907, %v906
        %v923 = vpack.c.b16 %v909, %v908
        %v924 = vpack.c.b16 %v911, %v910
        %v925 = vpack.c.b16 %v913, %v912
        %v926 = vpack.c.b16 %v915, %v914
        %v927 = vpack.c.b16 %v917, %v916
        %v928 = vpack.c.b16 %v919, %v918
        %v929 = vpack.c.b16 %v921, %v920
        %938 = vmatpush.bf16.msra.mxu0 %v929
        %939 = vmatpush.bf16.msra.mxu0 %v928
        %940 = vmatpush.bf16.msra.mxu0 %v927
        %941 = vmatpush.bf16.msra.mxu0 %v926
        %942 = vmatpush.bf16.msra.mxu0 %v925
        %943 = vmatpush.bf16.msra.mxu0 %v924
        %944 = vmatpush.bf16.msra.mxu0 %v923
        %945 = vmatpush.bf16.msra.mxu0 %v922
        %946 = vmatmul.bf16.gmra.mxu0 %v858
        %v947 = vpop.f32.mrf.mxu0
        %v948 = vadd.f32 %v792, %v947
        %v949 = vpop.f32.mrf.mxu0
        %v950 = vadd.f32 %v792, %v949
        %951 = vmatmul.bf16.gmra.mxu0 %v859
        %v952 = vpop.f32.mrf.mxu0
        %v953 = vadd.f32 %v792, %v952
        %v954 = vpop.f32.mrf.mxu0
        %v955 = vadd.f32 %v792, %v954
        %956 = vmatmul.bf16.gmra.mxu0 %v860
        %v957 = vpop.f32.mrf.mxu0
        %v958 = vadd.f32 %v792, %v957
        %v959 = vpop.f32.mrf.mxu0
        %v960 = vadd.f32 %v792, %v959
        %961 = vmatmul.bf16.gmra.mxu0 %v861
        %v962 = vpop.f32.mrf.mxu0
        %v963 = vadd.f32 %v792, %v962
        %v964 = vpop.f32.mrf.mxu0
        %v965 = vadd.f32 %v792, %v964
        %966 = vmatmul.bf16.gmra.mxu0 %v862
        %v967 = vpop.f32.mrf.mxu0
        %v968 = vadd.f32 %v792, %v967
        %v969 = vpop.f32.mrf.mxu0
        %v970 = vadd.f32 %v792, %v969
        %971 = vmatmul.bf16.gmra.mxu0 %v863
        %v972 = vpop.f32.mrf.mxu0
        %v973 = vadd.f32 %v792, %v972
        %v974 = vpop.f32.mrf.mxu0
        %v975 = vadd.f32 %v792, %v974
        %976 = vmatmul.bf16.gmra.mxu0 %v864
        %v977 = vpop.f32.mrf.mxu0
        %v978 = vadd.f32 %v792, %v977
        %v979 = vpop.f32.mrf.mxu0
        %v980 = vadd.f32 %v792, %v979
        %981 = vmatmul.bf16.gmra.mxu0 %v865
        %v982 = vpop.f32.mrf.mxu0
        %v983 = vadd.f32 %v792, %v982
        %v984 = vpop.f32.mrf.mxu0
        %v985 = vadd.f32 %v792, %v984
        %986 = vmatmul.bf16.gmra.mxu0 %v866
        %v987 = vpop.f32.mrf.mxu0
        %v988 = vadd.f32 %v792, %v987
        %v989 = vpop.f32.mrf.mxu0
        %v990 = vadd.f32 %v792, %v989
        %991 = vmatmul.bf16.gmra.mxu0 %v867
        %v992 = vpop.f32.mrf.mxu0
        %v993 = vadd.f32 %v792, %v992
        %v994 = vpop.f32.mrf.mxu0
        %v995 = vadd.f32 %v792, %v994
        %996 = vmatmul.bf16.gmra.mxu0 %v868
        %v997 = vpop.f32.mrf.mxu0
        %v998 = vadd.f32 %v792, %v997
        %v999 = vpop.f32.mrf.mxu0
        %v1000 = vadd.f32 %v792, %v999
        %1001 = vmatmul.bf16.gmra.mxu0 %v869
        %v1002 = vpop.f32.mrf.mxu0
        %v1003 = vadd.f32 %v792, %v1002
        %v1004 = vpop.f32.mrf.mxu0
        %v1005 = vadd.f32 %v792, %v1004
        %1006 = vmatmul.bf16.gmra.mxu0 %v870
        %v1007 = vpop.f32.mrf.mxu0
        %v1008 = vadd.f32 %v792, %v1007
        %v1009 = vpop.f32.mrf.mxu0
        %v1010 = vadd.f32 %v792, %v1009
        %1011 = vmatmul.bf16.gmra.mxu0 %v871
        %v1012 = vpop.f32.mrf.mxu0
        %v1013 = vadd.f32 %v792, %v1012
        %v1014 = vpop.f32.mrf.mxu0
        %v1015 = vadd.f32 %v792, %v1014
        %1016 = vmatmul.bf16.gmra.mxu0 %v872
        %v1017 = vpop.f32.mrf.mxu0
        %v1018 = vadd.f32 %v792, %v1017
        %v1019 = vpop.f32.mrf.mxu0
        %v1020 = vadd.f32 %v792, %v1019
        %1021 = vmatmul.bf16.gmra.mxu0 %v873
        %v1022 = vpop.f32.mrf.mxu0
        %v1023 = vadd.f32 %v792, %v1022
        %v1024 = vpop.f32.mrf.mxu0
        %v1025 = vadd.f32 %v792, %v1024
        %1026 = vdwg.mxu0
        %v1027 = vmax.f32 %v948, 0.0
        %v1028 = vmax.f32 %v950, 0.0
        %v1029 = vmax.f32 %v953, 0.0
        %v1030 = vmax.f32 %v955, 0.0
        %v1031 = vmax.f32 %v958, 0.0
        %v1032 = vmax.f32 %v960, 0.0
        %v1033 = vmax.f32 %v963, 0.0
        %v1034 = vmax.f32 %v965, 0.0
        %v1035 = vmax.f32 %v968, 0.0
        %v1036 = vmax.f32 %v970, 0.0
        %v1037 = vmax.f32 %v973, 0.0
        %v1038 = vmax.f32 %v975, 0.0
        %v1039 = vmax.f32 %v978, 0.0
        %v1040 = vmax.f32 %v980, 0.0
        %v1041 = vmax.f32 %v983, 0.0
        %v1042 = vmax.f32 %v985, 0.0
        %v1043 = vmax.f32 %v988, 0.0
        %v1044 = vmax.f32 %v990, 0.0
        %v1045 = vmax.f32 %v993, 0.0
        %v1046 = vmax.f32 %v995, 0.0
        %v1047 = vmax.f32 %v998, 0.0
        %v1048 = vmax.f32 %v1000, 0.0
        %v1049 = vmax.f32 %v1003, 0.0
        %v1050 = vmax.f32 %v1005, 0.0
        %v1051 = vmax.f32 %v1008, 0.0
        %v1052 = vmax.f32 %v1010, 0.0
        %v1053 = vmax.f32 %v1013, 0.0
        %v1054 = vmax.f32 %v1015, 0.0
        %v1055 = vmax.f32 %v1018, 0.0
        %v1056 = vmax.f32 %v1020, 0.0
        %v1057 = vmax.f32 %v1023, 0.0
        %v1058 = vmax.f32 %v1025, 0.0
        %v1059 = vpack.c.bf16 %v1028, %v1027
        %v1060 = vpack.c.bf16 %v1030, %v1029
        %v1061 = vpack.c.bf16 %v1032, %v1031
        %v1062 = vpack.c.bf16 %v1034, %v1033
        %v1063 = vpack.c.bf16 %v1036, %v1035
        %v1064 = vpack.c.bf16 %v1038, %v1037
        %v1065 = vpack.c.bf16 %v1040, %v1039
        %v1066 = vpack.c.bf16 %v1042, %v1041
        %v1067 = vpack.c.bf16 %v1044, %v1043
        %v1068 = vpack.c.bf16 %v1046, %v1045
        %v1069 = vpack.c.bf16 %v1048, %v1047
        %v1070 = vpack.c.bf16 %v1050, %v1049
        %v1071 = vpack.c.bf16 %v1052, %v1051
        %v1072 = vpack.c.bf16 %v1054, %v1053
        %v1073 = vpack.c.bf16 %v1056, %v1055
        %v1074 = vpack.c.bf16 %v1058, %v1057
        %v1075 = vld [vmem:[#allocation7] sm:$0xf]
        %v1076 = vld [vmem:[#allocation7 + $0x4] sm:$0xf]
        %v1077 = vld [vmem:[#allocation7 + $0x8] sm:$0xf]
        %v1078 = vld [vmem:[#allocation7 + $0xc] sm:$0xf]
        %v1079 = vld [vmem:[#allocation7 + $0x10] sm:$0xf]
        %v1080 = vld [vmem:[#allocation7 + $0x14] sm:$0xf]
        %v1081 = vld [vmem:[#allocation7 + $0x18] sm:$0xf]
        %v1082 = vld [vmem:[#allocation7 + $0x1c] sm:$0xf]
        %v1083 = vld [vmem:[#allocation7 + $0x20] sm:$0xf]
        %v1084 = vld [vmem:[#allocation7 + $0x24] sm:$0xf]
        %v1085 = vld [vmem:[#allocation7 + $0x28] sm:$0xf]
        %v1086 = vld [vmem:[#allocation7 + $0x2c] sm:$0xf]
        %v1087 = vld [vmem:[#allocation7 + $0x30] sm:$0xf]
        %v1088 = vld [vmem:[#allocation7 + $0x34] sm:$0xf]
        %v1089 = vld [vmem:[#allocation7 + $0x38] sm:$0xf]
        %v1090 = vld [vmem:[#allocation7 + $0x3c] sm:$0xf]
        %v1091 = vld [vmem:[%s4] sm:$0x1]
        %v1093 = vperm.slane %v1091, 0
        %v1111 = vunpack.c.l.b16 %v1075
        %v1112 = vunpack.c.l.b16 %v1076
        %v1113 = vunpack.c.l.b16 %v1077
        %v1114 = vunpack.c.l.b16 %v1078
        %v1115 = vunpack.c.l.b16 %v1079
        %v1116 = vunpack.c.l.b16 %v1080
        %v1117 = vunpack.c.l.b16 %v1081
        %v1118 = vunpack.c.l.b16 %v1082
        %v1119 = vunpack.c.l.b16 %v1083
        %v1120 = vunpack.c.l.b16 %v1084
        %v1121 = vunpack.c.l.b16 %v1085
        %v1122 = vunpack.c.l.b16 %v1086
        %v1123 = vunpack.c.l.b16 %v1087
        %v1124 = vunpack.c.l.b16 %v1088
        %v1125 = vunpack.c.l.b16 %v1089
        %v1126 = vunpack.c.l.b16 %v1090
        %v1127 = vpack.c.b16 %v1112, %v1111
        %v1128 = vpack.c.b16 %v1114, %v1113
        %v1129 = vpack.c.b16 %v1116, %v1115
        %v1130 = vpack.c.b16 %v1118, %v1117
        %v1131 = vpack.c.b16 %v1120, %v1119
        %v1132 = vpack.c.b16 %v1122, %v1121
        %v1133 = vpack.c.b16 %v1124, %v1123
        %v1134 = vpack.c.b16 %v1126, %v1125
        %1143 = vmatpush.bf16.msra.mxu0 %v1134
        %1144 = vmatpush.bf16.msra.mxu0 %v1133
        %1145 = vmatpush.bf16.msra.mxu0 %v1132
        %1146 = vmatpush.bf16.msra.mxu0 %v1131
        %1147 = vmatpush.bf16.msra.mxu0 %v1130
        %1148 = vmatpush.bf16.msra.mxu0 %v1129
        %1149 = vmatpush.bf16.msra.mxu0 %v1128
        %1150 = vmatpush.bf16.msra.mxu0 %v1127
        %1151 = vmatmul.bf16.gmra.mxu0 %v1059
        %v1152 = vpop.f32.mrf.mxu0
        %v1153 = vadd.f32 %v1093, %v1152
        %v1154 = vpop.f32.mrf.mxu0
        %v1155 = vadd.f32 %v1093, %v1154
        %1156 = vmatmul.bf16.gmra.mxu0 %v1060
        %v1157 = vpop.f32.mrf.mxu0
        %v1158 = vadd.f32 %v1093, %v1157
        %v1159 = vpop.f32.mrf.mxu0
        %v1160 = vadd.f32 %v1093, %v1159
        %1161 = vmatmul.bf16.gmra.mxu0 %v1061
        %v1162 = vpop.f32.mrf.mxu0
        %v1163 = vadd.f32 %v1093, %v1162
        %v1164 = vpop.f32.mrf.mxu0
        %v1165 = vadd.f32 %v1093, %v1164
        %1166 = vmatmul.bf16.gmra.mxu0 %v1062
        %v1167 = vpop.f32.mrf.mxu0
        %v1168 = vadd.f32 %v1093, %v1167
        %v1169 = vpop.f32.mrf.mxu0
        %v1170 = vadd.f32 %v1093, %v1169
        %1171 = vmatmul.bf16.gmra.mxu0 %v1063
        %v1172 = vpop.f32.mrf.mxu0
        %v1173 = vadd.f32 %v1093, %v1172
        %v1174 = vpop.f32.mrf.mxu0
        %v1175 = vadd.f32 %v1093, %v1174
        %1176 = vmatmul.bf16.gmra.mxu0 %v1064
        %v1177 = vpop.f32.mrf.mxu0
        %v1178 = vadd.f32 %v1093, %v1177
        %v1179 = vpop.f32.mrf.mxu0
        %v1180 = vadd.f32 %v1093, %v1179
        %1181 = vmatmul.bf16.gmra.mxu0 %v1065
        %v1182 = vpop.f32.mrf.mxu0
        %v1183 = vadd.f32 %v1093, %v1182
        %v1184 = vpop.f32.mrf.mxu0
        %v1185 = vadd.f32 %v1093, %v1184
        %1186 = vmatmul.bf16.gmra.mxu0 %v1066
        %v1187 = vpop.f32.mrf.mxu0
        %v1188 = vadd.f32 %v1093, %v1187
        %v1189 = vpop.f32.mrf.mxu0
        %v1190 = vadd.f32 %v1093, %v1189
        %1191 = vmatmul.bf16.gmra.mxu0 %v1067
        %v1192 = vpop.f32.mrf.mxu0
        %v1193 = vadd.f32 %v1093, %v1192
        %v1194 = vpop.f32.mrf.mxu0
        %v1195 = vadd.f32 %v1093, %v1194
        %1196 = vmatmul.bf16.gmra.mxu0 %v1068
        %v1197 = vpop.f32.mrf.mxu0
        %v1198 = vadd.f32 %v1093, %v1197
        %v1199 = vpop.f32.mrf.mxu0
        %v1200 = vadd.f32 %v1093, %v1199
        %1201 = vmatmul.bf16.gmra.mxu0 %v1069
        %v1202 = vpop.f32.mrf.mxu0
        %v1203 = vadd.f32 %v1093, %v1202
        %v1204 = vpop.f32.mrf.mxu0
        %v1205 = vadd.f32 %v1093, %v1204
        %1206 = vmatmul.bf16.gmra.mxu0 %v1070
        %v1207 = vpop.f32.mrf.mxu0
        %v1208 = vadd.f32 %v1093, %v1207
        %v1209 = vpop.f32.mrf.mxu0
        %v1210 = vadd.f32 %v1093, %v1209
        %1211 = vmatmul.bf16.gmra.mxu0 %v1071
        %v1212 = vpop.f32.mrf.mxu0
        %v1213 = vadd.f32 %v1093, %v1212
        %v1214 = vpop.f32.mrf.mxu0
        %v1215 = vadd.f32 %v1093, %v1214
        %1216 = vmatmul.bf16.gmra.mxu0 %v1072
        %v1217 = vpop.f32.mrf.mxu0
        %v1218 = vadd.f32 %v1093, %v1217
        %v1219 = vpop.f32.mrf.mxu0
        %v1220 = vadd.f32 %v1093, %v1219
        %1221 = vmatmul.bf16.gmra.mxu0 %v1073
        %v1222 = vpop.f32.mrf.mxu0
        %v1223 = vadd.f32 %v1093, %v1222
        %v1224 = vpop.f32.mrf.mxu0
        %v1225 = vadd.f32 %v1093, %v1224
        %1226 = vmatmul.bf16.gmra.mxu0 %v1074
        %v1227 = vpop.f32.mrf.mxu0
        %v1228 = vadd.f32 %v1093, %v1227
        %v1229 = vpop.f32.mrf.mxu0
        %v1230 = vadd.f32 %v1093, %v1229
        %1231 = vdwg.mxu0
        %v1232 = vmax.f32 %v1153, 0.0
        %v1233 = vmax.f32 %v1155, 0.0
        %v1234 = vmax.f32 %v1158, 0.0
        %v1235 = vmax.f32 %v1160, 0.0
        %v1236 = vmax.f32 %v1163, 0.0
        %v1237 = vmax.f32 %v1165, 0.0
        %v1238 = vmax.f32 %v1168, 0.0
        %v1239 = vmax.f32 %v1170, 0.0
        %v1240 = vmax.f32 %v1173, 0.0
        %v1241 = vmax.f32 %v1175, 0.0
        %v1242 = vmax.f32 %v1178, 0.0
        %v1243 = vmax.f32 %v1180, 0.0
        %v1244 = vmax.f32 %v1183, 0.0
        %v1245 = vmax.f32 %v1185, 0.0
        %v1246 = vmax.f32 %v1188, 0.0
        %v1247 = vmax.f32 %v1190, 0.0
        %v1248 = vmax.f32 %v1193, 0.0
        %v1249 = vmax.f32 %v1195, 0.0
        %v1250 = vmax.f32 %v1198, 0.0
        %v1251 = vmax.f32 %v1200, 0.0
        %v1252 = vmax.f32 %v1203, 0.0
        %v1253 = vmax.f32 %v1205, 0.0
        %v1254 = vmax.f32 %v1208, 0.0
        %v1255 = vmax.f32 %v1210, 0.0
        %v1256 = vmax.f32 %v1213, 0.0
        %v1257 = vmax.f32 %v1215, 0.0
        %v1258 = vmax.f32 %v1218, 0.0
        %v1259 = vmax.f32 %v1220, 0.0
        %v1260 = vmax.f32 %v1223, 0.0
        %v1261 = vmax.f32 %v1225, 0.0
        %v1262 = vmax.f32 %v1228, 0.0
        %v1263 = vmax.f32 %v1230, 0.0
        %v1264 = vpack.c.bf16 %v1233, %v1232
        %v1265 = vpack.c.bf16 %v1235, %v1234
        %v1266 = vpack.c.bf16 %v1237, %v1236
        %v1267 = vpack.c.bf16 %v1239, %v1238
        %v1268 = vpack.c.bf16 %v1241, %v1240
        %v1269 = vpack.c.bf16 %v1243, %v1242
        %v1270 = vpack.c.bf16 %v1245, %v1244
        %v1271 = vpack.c.bf16 %v1247, %v1246
        %v1272 = vpack.c.bf16 %v1249, %v1248
        %v1273 = vpack.c.bf16 %v1251, %v1250
        %v1274 = vpack.c.bf16 %v1253, %v1252
        %v1275 = vpack.c.bf16 %v1255, %v1254
        %v1276 = vpack.c.bf16 %v1257, %v1256
        %v1277 = vpack.c.bf16 %v1259, %v1258
        %v1278 = vpack.c.bf16 %v1261, %v1260
        %v1279 = vpack.c.bf16 %v1263, %v1262
        %v1280 = vld [vmem:[#allocation8] sm:$0xf]
        %v1281 = vld [vmem:[#allocation8 + $0x4] sm:$0xf]
        %v1282 = vld [vmem:[#allocation8 + $0x8] sm:$0xf]
        %v1283 = vld [vmem:[#allocation8 + $0xc] sm:$0xf]
        %v1284 = vld [vmem:[#allocation8 + $0x10] sm:$0xf]
        %v1285 = vld [vmem:[#allocation8 + $0x14] sm:$0xf]
        %v1286 = vld [vmem:[#allocation8 + $0x18] sm:$0xf]
        %v1287 = vld [vmem:[#allocation8 + $0x1c] sm:$0xf]
        %v1288 = vld [vmem:[#allocation8 + $0x20] sm:$0xf]
        %v1289 = vld [vmem:[#allocation8 + $0x24] sm:$0xf]
        %v1290 = vld [vmem:[#allocation8 + $0x28] sm:$0xf]
        %v1291 = vld [vmem:[#allocation8 + $0x2c] sm:$0xf]
        %v1292 = vld [vmem:[#allocation8 + $0x30] sm:$0xf]
        %v1293 = vld [vmem:[#allocation8 + $0x34] sm:$0xf]
        %v1294 = vld [vmem:[#allocation8 + $0x38] sm:$0xf]
        %v1295 = vld [vmem:[#allocation8 + $0x3c] sm:$0xf]
        %v1296 = vld [vmem:[%s6] sm:$0x1]
        %v1298 = vperm.slane %v1296, 0
        %v1316 = vunpack.c.l.b16 %v1280
        %v1317 = vunpack.c.l.b16 %v1281
        %v1318 = vunpack.c.l.b16 %v1282
        %v1319 = vunpack.c.l.b16 %v1283
        %v1320 = vunpack.c.l.b16 %v1284
        %v1321 = vunpack.c.l.b16 %v1285
        %v1322 = vunpack.c.l.b16 %v1286
        %v1323 = vunpack.c.l.b16 %v1287
        %v1324 = vunpack.c.l.b16 %v1288
        %v1325 = vunpack.c.l.b16 %v1289
        %v1326 = vunpack.c.l.b16 %v1290
        %v1327 = vunpack.c.l.b16 %v1291
        %v1328 = vunpack.c.l.b16 %v1292
        %v1329 = vunpack.c.l.b16 %v1293
        %v1330 = vunpack.c.l.b16 %v1294
        %v1331 = vunpack.c.l.b16 %v1295
        %v1332 = vpack.c.b16 %v1317, %v1316
        %v1333 = vpack.c.b16 %v1319, %v1318
        %v1334 = vpack.c.b16 %v1321, %v1320
        %v1335 = vpack.c.b16 %v1323, %v1322
        %v1336 = vpack.c.b16 %v1325, %v1324
        %v1337 = vpack.c.b16 %v1327, %v1326
        %v1338 = vpack.c.b16 %v1329, %v1328
        %v1339 = vpack.c.b16 %v1331, %v1330
        %1348 = vmatpush.bf16.msra.mxu0 %v1339
        %1349 = vmatpush.bf16.msra.mxu0 %v1338
        %1350 = vmatpush.bf16.msra.mxu0 %v1337
        %1351 = vmatpush.bf16.msra.mxu0 %v1336
        %1352 = vmatpush.bf16.msra.mxu0 %v1335
        %1353 = vmatpush.bf16.msra.mxu0 %v1334
        %1354 = vmatpush.bf16.msra.mxu0 %v1333
        %1355 = vmatpush.bf16.msra.mxu0 %v1332
        %1356 = vmatmul.bf16.gmra.mxu0 %v1264
        %v1357 = vpop.f32.mrf.mxu0
        %v1358 = vadd.f32 %v1298, %v1357
        %v1359 = vpop.f32.mrf.mxu0
        %v1360 = vadd.f32 %v1298, %v1359
        %1361 = vmatmul.bf16.gmra.mxu0 %v1265
        %v1362 = vpop.f32.mrf.mxu0
        %v1363 = vadd.f32 %v1298, %v1362
        %v1364 = vpop.f32.mrf.mxu0
        %v1365 = vadd.f32 %v1298, %v1364
        %1366 = vmatmul.bf16.gmra.mxu0 %v1266
        %v1367 = vpop.f32.mrf.mxu0
        %v1368 = vadd.f32 %v1298, %v1367
        %v1369 = vpop.f32.mrf.mxu0
        %v1370 = vadd.f32 %v1298, %v1369
        %1371 = vmatmul.bf16.gmra.mxu0 %v1267
        %v1372 = vpop.f32.mrf.mxu0
        %v1373 = vadd.f32 %v1298, %v1372
        %v1374 = vpop.f32.mrf.mxu0
        %v1375 = vadd.f32 %v1298, %v1374
        %1376 = vmatmul.bf16.gmra.mxu0 %v1268
        %v1377 = vpop.f32.mrf.mxu0
        %v1378 = vadd.f32 %v1298, %v1377
        %v1379 = vpop.f32.mrf.mxu0
        %v1380 = vadd.f32 %v1298, %v1379
        %1381 = vmatmul.bf16.gmra.mxu0 %v1269
        %v1382 = vpop.f32.mrf.mxu0
        %v1383 = vadd.f32 %v1298, %v1382
        %v1384 = vpop.f32.mrf.mxu0
        %v1385 = vadd.f32 %v1298, %v1384
        %1386 = vmatmul.bf16.gmra.mxu0 %v1270
        %v1387 = vpop.f32.mrf.mxu0
        %v1388 = vadd.f32 %v1298, %v1387
        %v1389 = vpop.f32.mrf.mxu0
        %v1390 = vadd.f32 %v1298, %v1389
        %1391 = vmatmul.bf16.gmra.mxu0 %v1271
        %v1392 = vpop.f32.mrf.mxu0
        %v1393 = vadd.f32 %v1298, %v1392
        %v1394 = vpop.f32.mrf.mxu0
        %v1395 = vadd.f32 %v1298, %v1394
        %1396 = vmatmul.bf16.gmra.mxu0 %v1272
        %v1397 = vpop.f32.mrf.mxu0
        %v1398 = vadd.f32 %v1298, %v1397
        %v1399 = vpop.f32.mrf.mxu0
        %v1400 = vadd.f32 %v1298, %v1399
        %1401 = vmatmul.bf16.gmra.mxu0 %v1273
        %v1402 = vpop.f32.mrf.mxu0
        %v1403 = vadd.f32 %v1298, %v1402
        %v1404 = vpop.f32.mrf.mxu0
        %v1405 = vadd.f32 %v1298, %v1404
        %1406 = vmatmul.bf16.gmra.mxu0 %v1274
        %v1407 = vpop.f32.mrf.mxu0
        %v1408 = vadd.f32 %v1298, %v1407
        %v1409 = vpop.f32.mrf.mxu0
        %v1410 = vadd.f32 %v1298, %v1409
        %1411 = vmatmul.bf16.gmra.mxu0 %v1275
        %v1412 = vpop.f32.mrf.mxu0
        %v1413 = vadd.f32 %v1298, %v1412
        %v1414 = vpop.f32.mrf.mxu0
        %v1415 = vadd.f32 %v1298, %v1414
        %1416 = vmatmul.bf16.gmra.mxu0 %v1276
        %v1417 = vpop.f32.mrf.mxu0
        %v1418 = vadd.f32 %v1298, %v1417
        %v1419 = vpop.f32.mrf.mxu0
        %v1420 = vadd.f32 %v1298, %v1419
        %1421 = vmatmul.bf16.gmra.mxu0 %v1277
        %v1422 = vpop.f32.mrf.mxu0
        %v1423 = vadd.f32 %v1298, %v1422
        %v1424 = vpop.f32.mrf.mxu0
        %v1425 = vadd.f32 %v1298, %v1424
        %1426 = vmatmul.bf16.gmra.mxu0 %v1278
        %v1427 = vpop.f32.mrf.mxu0
        %v1428 = vadd.f32 %v1298, %v1427
        %v1429 = vpop.f32.mrf.mxu0
        %v1430 = vadd.f32 %v1298, %v1429
        %1431 = vmatmul.bf16.gmra.mxu0 %v1279
        %v1432 = vpop.f32.mrf.mxu0
        %v1433 = vadd.f32 %v1298, %v1432
        %v1434 = vpop.f32.mrf.mxu0
        %v1435 = vadd.f32 %v1298, %v1434
        %1436 = vdwg.mxu0
        %v1437 = vmax.f32 %v1358, 0.0
        %v1438 = vmax.f32 %v1360, 0.0
        %v1439 = vmax.f32 %v1363, 0.0
        %v1440 = vmax.f32 %v1365, 0.0
        %v1441 = vmax.f32 %v1368, 0.0
        %v1442 = vmax.f32 %v1370, 0.0
        %v1443 = vmax.f32 %v1373, 0.0
        %v1444 = vmax.f32 %v1375, 0.0
        %v1445 = vmax.f32 %v1378, 0.0
        %v1446 = vmax.f32 %v1380, 0.0
        %v1447 = vmax.f32 %v1383, 0.0
        %v1448 = vmax.f32 %v1385, 0.0
        %v1449 = vmax.f32 %v1388, 0.0
        %v1450 = vmax.f32 %v1390, 0.0
        %v1451 = vmax.f32 %v1393, 0.0
        %v1452 = vmax.f32 %v1395, 0.0
        %v1453 = vmax.f32 %v1398, 0.0
        %v1454 = vmax.f32 %v1400, 0.0
        %v1455 = vmax.f32 %v1403, 0.0
        %v1456 = vmax.f32 %v1405, 0.0
        %v1457 = vmax.f32 %v1408, 0.0
        %v1458 = vmax.f32 %v1410, 0.0
        %v1459 = vmax.f32 %v1413, 0.0
        %v1460 = vmax.f32 %v1415, 0.0
        %v1461 = vmax.f32 %v1418, 0.0
        %v1462 = vmax.f32 %v1420, 0.0
        %v1463 = vmax.f32 %v1423, 0.0
        %v1464 = vmax.f32 %v1425, 0.0
        %v1465 = vmax.f32 %v1428, 0.0
        %v1466 = vmax.f32 %v1430, 0.0
        %v1467 = vmax.f32 %v1433, 0.0
        %v1468 = vmax.f32 %v1435, 0.0
        %v1469 = vpack.c.bf16 %v1438, %v1437
        %v1470 = vpack.c.bf16 %v1440, %v1439
        %v1471 = vpack.c.bf16 %v1442, %v1441
        %v1472 = vpack.c.bf16 %v1444, %v1443
        %v1473 = vpack.c.bf16 %v1446, %v1445
        %v1474 = vpack.c.bf16 %v1448, %v1447
        %v1475 = vpack.c.bf16 %v1450, %v1449
        %v1476 = vpack.c.bf16 %v1452, %v1451
        %v1477 = vpack.c.bf16 %v1454, %v1453
        %v1478 = vpack.c.bf16 %v1456, %v1455
        %v1479 = vpack.c.bf16 %v1458, %v1457
        %v1480 = vpack.c.bf16 %v1460, %v1459
        %v1481 = vpack.c.bf16 %v1462, %v1461
        %v1482 = vpack.c.bf16 %v1464, %v1463
        %v1483 = vpack.c.bf16 %v1466, %v1465
        %v1484 = vpack.c.bf16 %v1468, %v1467
        %v1485 = vld [vmem:[#allocation10] sm:$0xf]
        %v1486 = vld [vmem:[#allocation10 + $0x4] sm:$0xf]
        %v1487 = vld [vmem:[#allocation10 + $0x8] sm:$0xf]
        %v1488 = vld [vmem:[#allocation10 + $0xc] sm:$0xf]
        %v1489 = vld [vmem:[#allocation10 + $0x10] sm:$0xf]
        %v1490 = vld [vmem:[#allocation10 + $0x14] sm:$0xf]
        %v1491 = vld [vmem:[#allocation10 + $0x18] sm:$0xf]
        %v1492 = vld [vmem:[#allocation10 + $0x1c] sm:$0xf]
        %v1493 = vld [vmem:[#allocation10 + $0x20] sm:$0xf]
        %v1494 = vld [vmem:[#allocation10 + $0x24] sm:$0xf]
        %v1495 = vld [vmem:[#allocation10 + $0x28] sm:$0xf]
        %v1496 = vld [vmem:[#allocation10 + $0x2c] sm:$0xf]
        %v1497 = vld [vmem:[#allocation10 + $0x30] sm:$0xf]
        %v1498 = vld [vmem:[#allocation10 + $0x34] sm:$0xf]
        %v1499 = vld [vmem:[#allocation10 + $0x38] sm:$0xf]
        %v1500 = vld [vmem:[#allocation10 + $0x3c] sm:$0xf]
        %v1501 = vld [vmem:[%s8] sm:$0x1]
        %v1503 = vperm.slane %v1501, 0
        %v1521 = vunpack.c.l.b16 %v1485
        %v1522 = vunpack.c.l.b16 %v1486
        %v1523 = vunpack.c.l.b16 %v1487
        %v1524 = vunpack.c.l.b16 %v1488
        %v1525 = vunpack.c.l.b16 %v1489
        %v1526 = vunpack.c.l.b16 %v1490
        %v1527 = vunpack.c.l.b16 %v1491
        %v1528 = vunpack.c.l.b16 %v1492
        %v1529 = vunpack.c.l.b16 %v1493
        %v1530 = vunpack.c.l.b16 %v1494
        %v1531 = vunpack.c.l.b16 %v1495
        %v1532 = vunpack.c.l.b16 %v1496
        %v1533 = vunpack.c.l.b16 %v1497
        %v1534 = vunpack.c.l.b16 %v1498
        %v1535 = vunpack.c.l.b16 %v1499
        %v1536 = vunpack.c.l.b16 %v1500
        %v1537 = vpack.c.b16 %v1522, %v1521
        %v1538 = vpack.c.b16 %v1524, %v1523
        %v1539 = vpack.c.b16 %v1526, %v1525
        %v1540 = vpack.c.b16 %v1528, %v1527
        %v1541 = vpack.c.b16 %v1530, %v1529
        %v1542 = vpack.c.b16 %v1532, %v1531
        %v1543 = vpack.c.b16 %v1534, %v1533
        %v1544 = vpack.c.b16 %v1536, %v1535
        %1553 = vmatpush.bf16.msra.mxu0 %v1544
        %1554 = vmatpush.bf16.msra.mxu0 %v1543
        %1555 = vmatpush.bf16.msra.mxu0 %v1542
        %1556 = vmatpush.bf16.msra.mxu0 %v1541
        %1557 = vmatpush.bf16.msra.mxu0 %v1540
        %1558 = vmatpush.bf16.msra.mxu0 %v1539
        %1559 = vmatpush.bf16.msra.mxu0 %v1538
        %1560 = vmatpush.bf16.msra.mxu0 %v1537
        %1561 = vmatmul.bf16.gmra.mxu0 %v1469
        %v1562 = vpop.f32.mrf.mxu0
        %v1563 = vadd.f32 %v1503, %v1562
        %v1564 = vpop.f32.mrf.mxu0
        %v1565 = vadd.f32 %v1503, %v1564
        %1566 = vmatmul.bf16.gmra.mxu0 %v1470
        %v1567 = vpop.f32.mrf.mxu0
        %v1568 = vadd.f32 %v1503, %v1567
        %v1569 = vpop.f32.mrf.mxu0
        %v1570 = vadd.f32 %v1503, %v1569
        %1571 = vmatmul.bf16.gmra.mxu0 %v1471
        %v1572 = vpop.f32.mrf.mxu0
        %v1573 = vadd.f32 %v1503, %v1572
        %v1574 = vpop.f32.mrf.mxu0
        %v1575 = vadd.f32 %v1503, %v1574
        %1576 = vmatmul.bf16.gmra.mxu0 %v1472
        %v1577 = vpop.f32.mrf.mxu0
        %v1578 = vadd.f32 %v1503, %v1577
        %v1579 = vpop.f32.mrf.mxu0
        %v1580 = vadd.f32 %v1503, %v1579
        %1581 = vmatmul.bf16.gmra.mxu0 %v1473
        %v1582 = vpop.f32.mrf.mxu0
        %v1583 = vadd.f32 %v1503, %v1582
        %v1584 = vpop.f32.mrf.mxu0
        %v1585 = vadd.f32 %v1503, %v1584
        %1586 = vmatmul.bf16.gmra.mxu0 %v1474
        %v1587 = vpop.f32.mrf.mxu0
        %v1588 = vadd.f32 %v1503, %v1587
        %v1589 = vpop.f32.mrf.mxu0
        %v1590 = vadd.f32 %v1503, %v1589
        %1591 = vmatmul.bf16.gmra.mxu0 %v1475
        %v1592 = vpop.f32.mrf.mxu0
        %v1593 = vadd.f32 %v1503, %v1592
        %v1594 = vpop.f32.mrf.mxu0
        %v1595 = vadd.f32 %v1503, %v1594
        %1596 = vmatmul.bf16.gmra.mxu0 %v1476
        %v1597 = vpop.f32.mrf.mxu0
        %v1598 = vadd.f32 %v1503, %v1597
        %v1599 = vpop.f32.mrf.mxu0
        %v1600 = vadd.f32 %v1503, %v1599
        %1601 = vmatmul.bf16.gmra.mxu0 %v1477
        %v1602 = vpop.f32.mrf.mxu0
        %v1603 = vadd.f32 %v1503, %v1602
        %v1604 = vpop.f32.mrf.mxu0
        %v1605 = vadd.f32 %v1503, %v1604
        %1606 = vmatmul.bf16.gmra.mxu0 %v1478
        %v1607 = vpop.f32.mrf.mxu0
        %v1608 = vadd.f32 %v1503, %v1607
        %v1609 = vpop.f32.mrf.mxu0
        %v1610 = vadd.f32 %v1503, %v1609
        %1611 = vmatmul.bf16.gmra.mxu0 %v1479
        %v1612 = vpop.f32.mrf.mxu0
        %v1613 = vadd.f32 %v1503, %v1612
        %v1614 = vpop.f32.mrf.mxu0
        %v1615 = vadd.f32 %v1503, %v1614
        %1616 = vmatmul.bf16.gmra.mxu0 %v1480
        %v1617 = vpop.f32.mrf.mxu0
        %v1618 = vadd.f32 %v1503, %v1617
        %v1619 = vpop.f32.mrf.mxu0
        %v1620 = vadd.f32 %v1503, %v1619
        %1621 = vmatmul.bf16.gmra.mxu0 %v1481
        %v1622 = vpop.f32.mrf.mxu0
        %v1623 = vadd.f32 %v1503, %v1622
        %v1624 = vpop.f32.mrf.mxu0
        %v1625 = vadd.f32 %v1503, %v1624
        %1626 = vmatmul.bf16.gmra.mxu0 %v1482
        %v1627 = vpop.f32.mrf.mxu0
        %v1628 = vadd.f32 %v1503, %v1627
        %v1629 = vpop.f32.mrf.mxu0
        %v1630 = vadd.f32 %v1503, %v1629
        %1631 = vmatmul.bf16.gmra.mxu0 %v1483
        %v1632 = vpop.f32.mrf.mxu0
        %v1633 = vadd.f32 %v1503, %v1632
        %v1634 = vpop.f32.mrf.mxu0
        %v1635 = vadd.f32 %v1503, %v1634
        %1636 = vmatmul.bf16.gmra.mxu0 %v1484
        %v1637 = vpop.f32.mrf.mxu0
        %v1638 = vadd.f32 %v1503, %v1637
        %v1639 = vpop.f32.mrf.mxu0
        %v1640 = vadd.f32 %v1503, %v1639
        %1641 = vdwg.mxu0
        %v1642 = vlaneseq
        %v1643 = vand.u32 %v1642, 127
        %vm1644 = vcmp.lt.s32.totalorder %v1643, 16
        %v1645 = vsel %vm1644, %v1563, -1e+30
        %v1646 = vsel %vm1644, %v1565, -1e+30
        %v1647 = vsel %vm1644, %v1568, -1e+30
        %v1648 = vsel %vm1644, %v1570, -1e+30
        %v1649 = vsel %vm1644, %v1573, -1e+30
        %v1650 = vsel %vm1644, %v1575, -1e+30
        %v1651 = vsel %vm1644, %v1578, -1e+30
        %v1652 = vsel %vm1644, %v1580, -1e+30
        %v1653 = vsel %vm1644, %v1583, -1e+30
        %v1654 = vsel %vm1644, %v1585, -1e+30
        %v1655 = vsel %vm1644, %v1588, -1e+30
        %v1656 = vsel %vm1644, %v1590, -1e+30
        %v1657 = vsel %vm1644, %v1593, -1e+30
        %v1658 = vsel %vm1644, %v1595, -1e+30
        %v1659 = vsel %vm1644, %v1598, -1e+30
        %v1660 = vsel %vm1644, %v1600, -1e+30
        %v1661 = vsel %vm1644, %v1603, -1e+30
        %v1662 = vsel %vm1644, %v1605, -1e+30
        %v1663 = vsel %vm1644, %v1608, -1e+30
        %v1664 = vsel %vm1644, %v1610, -1e+30
        %v1665 = vsel %vm1644, %v1613, -1e+30
        %v1666 = vsel %vm1644, %v1615, -1e+30
        %v1667 = vsel %vm1644, %v1618, -1e+30
        %v1668 = vsel %vm1644, %v1620, -1e+30
        %v1669 = vsel %vm1644, %v1623, -1e+30
        %v1670 = vsel %vm1644, %v1625, -1e+30
        %v1671 = vsel %vm1644, %v1628, -1e+30
        %v1672 = vsel %vm1644, %v1630, -1e+30
        %v1673 = vsel %vm1644, %v1633, -1e+30
        %v1674 = vsel %vm1644, %v1635, -1e+30
        %v1675 = vsel %vm1644, %v1638, -1e+30
        %v1676 = vsel %vm1644, %v1640, -1e+30
        %1677 = vmax.xlane.f32.xlu0 %v1645
        %v1678 = vpop.xlane.xlu0 %1677
        %1679 = vmax.xlane.f32.xlu0 %v1646
        %v1680 = vpop.xlane.xlu0 %1679
        %1681 = vmax.xlane.f32.xlu0 %v1647
        %v1682 = vpop.xlane.xlu0 %1681
        %1683 = vmax.xlane.f32.xlu0 %v1648
        %v1684 = vpop.xlane.xlu0 %1683
        %1685 = vmax.xlane.f32.xlu0 %v1649
        %v1686 = vpop.xlane.xlu0 %1685
        %1687 = vmax.xlane.f32.xlu0 %v1650
        %v1688 = vpop.xlane.xlu0 %1687
        %1689 = vmax.xlane.f32.xlu0 %v1651
        %v1690 = vpop.xlane.xlu0 %1689
        %1691 = vmax.xlane.f32.xlu0 %v1652
        %v1692 = vpop.xlane.xlu0 %1691
        %1693 = vmax.xlane.f32.xlu0 %v1653
        %v1694 = vpop.xlane.xlu0 %1693
        %1695 = vmax.xlane.f32.xlu0 %v1654
        %v1696 = vpop.xlane.xlu0 %1695
        %1697 = vmax.xlane.f32.xlu0 %v1655
        %v1698 = vpop.xlane.xlu0 %1697
        %1699 = vmax.xlane.f32.xlu0 %v1656
        %v1700 = vpop.xlane.xlu0 %1699
        %1701 = vmax.xlane.f32.xlu0 %v1657
        %v1702 = vpop.xlane.xlu0 %1701
        %1703 = vmax.xlane.f32.xlu0 %v1658
        %v1704 = vpop.xlane.xlu0 %1703
        %1705 = vmax.xlane.f32.xlu0 %v1659
        %v1706 = vpop.xlane.xlu0 %1705
        %1707 = vmax.xlane.f32.xlu0 %v1660
        %v1708 = vpop.xlane.xlu0 %1707
        %1709 = vmax.xlane.f32.xlu0 %v1661
        %v1710 = vpop.xlane.xlu0 %1709
        %1711 = vmax.xlane.f32.xlu0 %v1662
        %v1712 = vpop.xlane.xlu0 %1711
        %1713 = vmax.xlane.f32.xlu0 %v1663
        %v1714 = vpop.xlane.xlu0 %1713
        %1715 = vmax.xlane.f32.xlu0 %v1664
        %v1716 = vpop.xlane.xlu0 %1715
        %1717 = vmax.xlane.f32.xlu0 %v1665
        %v1718 = vpop.xlane.xlu0 %1717
        %1719 = vmax.xlane.f32.xlu0 %v1666
        %v1720 = vpop.xlane.xlu0 %1719
        %1721 = vmax.xlane.f32.xlu0 %v1667
        %v1722 = vpop.xlane.xlu0 %1721
        %1723 = vmax.xlane.f32.xlu0 %v1668
        %v1724 = vpop.xlane.xlu0 %1723
        %1725 = vmax.xlane.f32.xlu0 %v1669
        %v1726 = vpop.xlane.xlu0 %1725
        %1727 = vmax.xlane.f32.xlu0 %v1670
        %v1728 = vpop.xlane.xlu0 %1727
        %1729 = vmax.xlane.f32.xlu0 %v1671
        %v1730 = vpop.xlane.xlu0 %1729
        %1731 = vmax.xlane.f32.xlu0 %v1672
        %v1732 = vpop.xlane.xlu0 %1731
        %1733 = vmax.xlane.f32.xlu0 %v1673
        %v1734 = vpop.xlane.xlu0 %1733
        %1735 = vmax.xlane.f32.xlu0 %v1674
        %v1736 = vpop.xlane.xlu0 %1735
        %1737 = vmax.xlane.f32.xlu0 %v1675
        %v1738 = vpop.xlane.xlu0 %1737
        %1739 = vmax.xlane.f32.xlu0 %v1676
        %v1740 = vpop.xlane.xlu0 %1739
        %v1741 = vsub.f32 %v1645, %v1678
        %v1742 = vsub.f32 %v1646, %v1680
        %v1743 = vsub.f32 %v1647, %v1682
        %v1744 = vsub.f32 %v1648, %v1684
        %v1745 = vsub.f32 %v1649, %v1686
        %v1746 = vsub.f32 %v1650, %v1688
        %v1747 = vsub.f32 %v1651, %v1690
        %v1748 = vsub.f32 %v1652, %v1692
        %v1749 = vsub.f32 %v1653, %v1694
        %v1750 = vsub.f32 %v1654, %v1696
        %v1751 = vsub.f32 %v1655, %v1698
        %v1752 = vsub.f32 %v1656, %v1700
        %v1753 = vsub.f32 %v1657, %v1702
        %v1754 = vsub.f32 %v1658, %v1704
        %v1755 = vsub.f32 %v1659, %v1706
        %v1756 = vsub.f32 %v1660, %v1708
        %v1757 = vsub.f32 %v1661, %v1710
        %v1758 = vsub.f32 %v1662, %v1712
        %v1759 = vsub.f32 %v1663, %v1714
        %v1760 = vsub.f32 %v1664, %v1716
        %v1761 = vsub.f32 %v1665, %v1718
        %v1762 = vsub.f32 %v1666, %v1720
        %v1763 = vsub.f32 %v1667, %v1722
        %v1764 = vsub.f32 %v1668, %v1724
        %v1765 = vsub.f32 %v1669, %v1726
        %v1766 = vsub.f32 %v1670, %v1728
        %v1767 = vsub.f32 %v1671, %v1730
        %v1768 = vsub.f32 %v1672, %v1732
        %v1769 = vsub.f32 %v1673, %v1734
        %v1770 = vsub.f32 %v1674, %v1736
        %v1771 = vsub.f32 %v1675, %v1738
        %v1772 = vsub.f32 %v1676, %v1740
        %v1773 = vmul.f32 %v1741, 1.442695
        %v1774 = vpow.pop %v1773
        %v1775 = vmul.f32 %v1742, 1.442695
        %v1776 = vpow.pop %v1775
        %v1777 = vmul.f32 %v1743, 1.442695
        %v1778 = vpow.pop %v1777
        %v1779 = vmul.f32 %v1744, 1.442695
        %v1780 = vpow.pop %v1779
        %v1781 = vmul.f32 %v1745, 1.442695
        %v1782 = vpow.pop %v1781
        %v1783 = vmul.f32 %v1746, 1.442695
        %v1784 = vpow.pop %v1783
        %v1785 = vmul.f32 %v1747, 1.442695
        %v1786 = vpow.pop %v1785
        %v1787 = vmul.f32 %v1748, 1.442695
        %v1788 = vpow.pop %v1787
        %v1789 = vmul.f32 %v1749, 1.442695
        %v1790 = vpow.pop %v1789
        %v1791 = vmul.f32 %v1750, 1.442695
        %v1792 = vpow.pop %v1791
        %v1793 = vmul.f32 %v1751, 1.442695
        %v1794 = vpow.pop %v1793
        %v1795 = vmul.f32 %v1752, 1.442695
        %v1796 = vpow.pop %v1795
        %v1797 = vmul.f32 %v1753, 1.442695
        %v1798 = vpow.pop %v1797
        %v1799 = vmul.f32 %v1754, 1.442695
        %v1800 = vpow.pop %v1799
        %v1801 = vmul.f32 %v1755, 1.442695
        %v1802 = vpow.pop %v1801
        %v1803 = vmul.f32 %v1756, 1.442695
        %v1804 = vpow.pop %v1803
        %v1805 = vmul.f32 %v1757, 1.442695
        %v1806 = vpow.pop %v1805
        %v1807 = vmul.f32 %v1758, 1.442695
        %v1808 = vpow.pop %v1807
        %v1809 = vmul.f32 %v1759, 1.442695
        %v1810 = vpow.pop %v1809
        %v1811 = vmul.f32 %v1760, 1.442695
        %v1812 = vpow.pop %v1811
        %v1813 = vmul.f32 %v1761, 1.442695
        %v1814 = vpow.pop %v1813
        %v1815 = vmul.f32 %v1762, 1.442695
        %v1816 = vpow.pop %v1815
        %v1817 = vmul.f32 %v1763, 1.442695
        %v1818 = vpow.pop %v1817
        %v1819 = vmul.f32 %v1764, 1.442695
        %v1820 = vpow.pop %v1819
        %v1821 = vmul.f32 %v1765, 1.442695
        %v1822 = vpow.pop %v1821
        %v1823 = vmul.f32 %v1766, 1.442695
        %v1824 = vpow.pop %v1823
        %v1825 = vmul.f32 %v1767, 1.442695
        %v1826 = vpow.pop %v1825
        %v1827 = vmul.f32 %v1768, 1.442695
        %v1828 = vpow.pop %v1827
        %v1829 = vmul.f32 %v1769, 1.442695
        %v1830 = vpow.pop %v1829
        %v1831 = vmul.f32 %v1770, 1.442695
        %v1832 = vpow.pop %v1831
        %v1833 = vmul.f32 %v1771, 1.442695
        %v1834 = vpow.pop %v1833
        %v1835 = vmul.f32 %v1772, 1.442695
        %v1836 = vpow.pop %v1835
        %1837 = vadd.xlane.f32.xlu0 %v1774
        %v1838 = vpop.xlane.xlu0 %1837
        %1839 = vadd.xlane.f32.xlu0 %v1776
        %v1840 = vpop.xlane.xlu0 %1839
        %1841 = vadd.xlane.f32.xlu0 %v1778
        %v1842 = vpop.xlane.xlu0 %1841
        %1843 = vadd.xlane.f32.xlu0 %v1780
        %v1844 = vpop.xlane.xlu0 %1843
        %1845 = vadd.xlane.f32.xlu0 %v1782
        %v1846 = vpop.xlane.xlu0 %1845
        %1847 = vadd.xlane.f32.xlu0 %v1784
        %v1848 = vpop.xlane.xlu0 %1847
        %1849 = vadd.xlane.f32.xlu0 %v1786
        %v1850 = vpop.xlane.xlu0 %1849
        %1851 = vadd.xlane.f32.xlu0 %v1788
        %v1852 = vpop.xlane.xlu0 %1851
        %1853 = vadd.xlane.f32.xlu0 %v1790
        %v1854 = vpop.xlane.xlu0 %1853
        %1855 = vadd.xlane.f32.xlu0 %v1792
        %v1856 = vpop.xlane.xlu0 %1855
        %1857 = vadd.xlane.f32.xlu0 %v1794
        %v1858 = vpop.xlane.xlu0 %1857
        %1859 = vadd.xlane.f32.xlu0 %v1796
        %v1860 = vpop.xlane.xlu0 %1859
        %1861 = vadd.xlane.f32.xlu0 %v1798
        %v1862 = vpop.xlane.xlu0 %1861
        %1863 = vadd.xlane.f32.xlu0 %v1800
        %v1864 = vpop.xlane.xlu0 %1863
        %1865 = vadd.xlane.f32.xlu0 %v1802
        %v1866 = vpop.xlane.xlu0 %1865
        %1867 = vadd.xlane.f32.xlu0 %v1804
        %v1868 = vpop.xlane.xlu0 %1867
        %1869 = vadd.xlane.f32.xlu0 %v1806
        %v1870 = vpop.xlane.xlu0 %1869
        %1871 = vadd.xlane.f32.xlu0 %v1808
        %v1872 = vpop.xlane.xlu0 %1871
        %1873 = vadd.xlane.f32.xlu0 %v1810
        %v1874 = vpop.xlane.xlu0 %1873
        %1875 = vadd.xlane.f32.xlu0 %v1812
        %v1876 = vpop.xlane.xlu0 %1875
        %1877 = vadd.xlane.f32.xlu0 %v1814
        %v1878 = vpop.xlane.xlu0 %1877
        %1879 = vadd.xlane.f32.xlu0 %v1816
        %v1880 = vpop.xlane.xlu0 %1879
        %1881 = vadd.xlane.f32.xlu0 %v1818
        %v1882 = vpop.xlane.xlu0 %1881
        %1883 = vadd.xlane.f32.xlu0 %v1820
        %v1884 = vpop.xlane.xlu0 %1883
        %1885 = vadd.xlane.f32.xlu0 %v1822
        %v1886 = vpop.xlane.xlu0 %1885
        %1887 = vadd.xlane.f32.xlu0 %v1824
        %v1888 = vpop.xlane.xlu0 %1887
        %1889 = vadd.xlane.f32.xlu0 %v1826
        %v1890 = vpop.xlane.xlu0 %1889
        %1891 = vadd.xlane.f32.xlu0 %v1828
        %v1892 = vpop.xlane.xlu0 %1891
        %1893 = vadd.xlane.f32.xlu0 %v1830
        %v1894 = vpop.xlane.xlu0 %1893
        %1895 = vadd.xlane.f32.xlu0 %v1832
        %v1896 = vpop.xlane.xlu0 %1895
        %1897 = vadd.xlane.f32.xlu0 %v1834
        %v1898 = vpop.xlane.xlu0 %1897
        %1899 = vadd.xlane.f32.xlu0 %v1836
        %v1900 = vpop.xlane.xlu0 %1899
        %v1901 = vrcp.pop %v1838
        %v1902 = vrcp.pop %v1840
        %v1903 = vrcp.pop %v1842
        %v1904 = vrcp.pop %v1844
        %v1905 = vrcp.pop %v1846
        %v1906 = vrcp.pop %v1848
        %v1907 = vrcp.pop %v1850
        %v1908 = vrcp.pop %v1852
        %v1909 = vrcp.pop %v1854
        %v1910 = vrcp.pop %v1856
        %v1911 = vrcp.pop %v1858
        %v1912 = vrcp.pop %v1860
        %v1913 = vrcp.pop %v1862
        %v1914 = vrcp.pop %v1864
        %v1915 = vrcp.pop %v1866
        %v1916 = vrcp.pop %v1868
        %v1917 = vrcp.pop %v1870
        %v1918 = vrcp.pop %v1872
        %v1919 = vrcp.pop %v1874
        %v1920 = vrcp.pop %v1876
        %v1921 = vrcp.pop %v1878
        %v1922 = vrcp.pop %v1880
        %v1923 = vrcp.pop %v1882
        %v1924 = vrcp.pop %v1884
        %v1925 = vrcp.pop %v1886
        %v1926 = vrcp.pop %v1888
        %v1927 = vrcp.pop %v1890
        %v1928 = vrcp.pop %v1892
        %v1929 = vrcp.pop %v1894
        %v1930 = vrcp.pop %v1896
        %v1931 = vrcp.pop %v1898
        %v1932 = vrcp.pop %v1900
        %v1933 = vmul.f32 %v1774, %v1901
        %v1934 = vmul.f32 %v1776, %v1902
        %v1935 = vmul.f32 %v1778, %v1903
        %v1936 = vmul.f32 %v1780, %v1904
        %v1937 = vmul.f32 %v1782, %v1905
        %v1938 = vmul.f32 %v1784, %v1906
        %v1939 = vmul.f32 %v1786, %v1907
        %v1940 = vmul.f32 %v1788, %v1908
        %v1941 = vmul.f32 %v1790, %v1909
        %v1942 = vmul.f32 %v1792, %v1910
        %v1943 = vmul.f32 %v1794, %v1911
        %v1944 = vmul.f32 %v1796, %v1912
        %v1945 = vmul.f32 %v1798, %v1913
        %v1946 = vmul.f32 %v1800, %v1914
        %v1947 = vmul.f32 %v1802, %v1915
        %v1948 = vmul.f32 %v1804, %v1916
        %v1949 = vmul.f32 %v1806, %v1917
        %v1950 = vmul.f32 %v1808, %v1918
        %v1951 = vmul.f32 %v1810, %v1919
        %v1952 = vmul.f32 %v1812, %v1920
        %v1953 = vmul.f32 %v1814, %v1921
        %v1954 = vmul.f32 %v1816, %v1922
        %v1955 = vmul.f32 %v1818, %v1923
        %v1956 = vmul.f32 %v1820, %v1924
        %v1957 = vmul.f32 %v1822, %v1925
        %v1958 = vmul.f32 %v1824, %v1926
        %v1959 = vmul.f32 %v1826, %v1927
        %v1960 = vmul.f32 %v1828, %v1928
        %v1961 = vmul.f32 %v1830, %v1929
        %v1962 = vmul.f32 %v1832, %v1930
        %v1963 = vmul.f32 %v1834, %v1931
        %v1964 = vmul.f32 %v1836, %v1932
        %1965 = vst [vmem:[%s731] sm:$0xff] %v1933
        %1966 = vst [vmem:[%s731 + $0x8] sm:$0xff] %v1934
        %1967 = vst [vmem:[%s731 + $0x10] sm:$0xff] %v1935
        %1968 = vst [vmem:[%s731 + $0x18] sm:$0xff] %v1936
        %1969 = vst [vmem:[%s731 + $0x20] sm:$0xff] %v1937
        %1970 = vst [vmem:[%s731 + $0x28] sm:$0xff] %v1938
        %1971 = vst [vmem:[%s731 + $0x30] sm:$0xff] %v1939
        %1972 = vst [vmem:[%s731 + $0x38] sm:$0xff] %v1940
        %1973 = vst [vmem:[%s731 + $0x40] sm:$0xff] %v1941
        %1974 = vst [vmem:[%s731 + $0x48] sm:$0xff] %v1942
        %1975 = vst [vmem:[%s731 + $0x50] sm:$0xff] %v1943
        %1976 = vst [vmem:[%s731 + $0x58] sm:$0xff] %v1944
        %1977 = vst [vmem:[%s731 + $0x60] sm:$0xff] %v1945
        %1978 = vst [vmem:[%s731 + $0x68] sm:$0xff] %v1946
        %1979 = vst [vmem:[%s731 + $0x70] sm:$0xff] %v1947
        %1980 = vst [vmem:[%s731 + $0x78] sm:$0xff] %v1948
        %1981 = vst [vmem:[%s731 + $0x80] sm:$0xff] %v1949
        %1982 = vst [vmem:[%s731 + $0x88] sm:$0xff] %v1950
        %1983 = vst [vmem:[%s731 + $0x90] sm:$0xff] %v1951
        %1984 = vst [vmem:[%s731 + $0x98] sm:$0xff] %v1952
        %1985 = vst [vmem:[%s731 + $0xa0] sm:$0xff] %v1953
        %1986 = vst [vmem:[%s731 + $0xa8] sm:$0xff] %v1954
        %1987 = vst [vmem:[%s731 + $0xb0] sm:$0xff] %v1955
        %1988 = vst [vmem:[%s731 + $0xb8] sm:$0xff] %v1956
        %1989 = vst [vmem:[%s731 + $0xc0] sm:$0xff] %v1957
        %1990 = vst [vmem:[%s731 + $0xc8] sm:$0xff] %v1958
        %1991 = vst [vmem:[%s731 + $0xd0] sm:$0xff] %v1959
        %1992 = vst [vmem:[%s731 + $0xd8] sm:$0xff] %v1960
        %1993 = vst [vmem:[%s731 + $0xe0] sm:$0xff] %v1961
        %1994 = vst [vmem:[%s731 + $0xe8] sm:$0xff] %v1962
        %1995 = vst [vmem:[%s731 + $0xf0] sm:$0xff] %v1963
        %1996 = vst [vmem:[%s731 + $0xf8] sm:$0xff] %v1964
        %v1997 = vpack.c.bf16 %v1934, %v1933
        %v1998 = vpack.c.bf16 %v1936, %v1935
        %v1999 = vpack.c.bf16 %v1938, %v1937
        %v2000 = vpack.c.bf16 %v1940, %v1939
        %v2001 = vpack.c.bf16 %v1942, %v1941
        %v2002 = vpack.c.bf16 %v1944, %v1943
        %v2003 = vpack.c.bf16 %v1946, %v1945
        %v2004 = vpack.c.bf16 %v1948, %v1947
        %v2005 = vpack.c.bf16 %v1950, %v1949
        %v2006 = vpack.c.bf16 %v1952, %v1951
        %v2007 = vpack.c.bf16 %v1954, %v1953
        %v2008 = vpack.c.bf16 %v1956, %v1955
        %v2009 = vpack.c.bf16 %v1958, %v1957
        %v2010 = vpack.c.bf16 %v1960, %v1959
        %v2011 = vpack.c.bf16 %v1962, %v1961
        %v2012 = vpack.c.bf16 %v1964, %v1963
        %v2013 = vld [vmem:[#allocation11] sm:$0xf]
        %v2014 = vld [vmem:[#allocation11 + $0x4] sm:$0xf]
        %v2015 = vld [vmem:[#allocation11 + $0x8] sm:$0xf]
        %v2016 = vld [vmem:[#allocation11 + $0xc] sm:$0xf]
        %v2017 = vld [vmem:[#allocation11 + $0x10] sm:$0xf]
        %v2018 = vld [vmem:[#allocation11 + $0x14] sm:$0xf]
        %v2019 = vld [vmem:[#allocation11 + $0x18] sm:$0xf]
        %v2020 = vld [vmem:[#allocation11 + $0x1c] sm:$0xf]
        %v2021 = vld [vmem:[#allocation11 + $0x20] sm:$0xf]
        %v2022 = vld [vmem:[#allocation11 + $0x24] sm:$0xf]
        %v2023 = vld [vmem:[#allocation11 + $0x28] sm:$0xf]
        %v2024 = vld [vmem:[#allocation11 + $0x2c] sm:$0xf]
        %v2025 = vld [vmem:[#allocation11 + $0x30] sm:$0xf]
        %v2026 = vld [vmem:[#allocation11 + $0x34] sm:$0xf]
        %v2027 = vld [vmem:[#allocation11 + $0x38] sm:$0xf]
        %v2028 = vld [vmem:[#allocation11 + $0x3c] sm:$0xf]
        %v2029 = vld [vmem:[%s10] sm:$0x1]
        %v2031 = vperm.slane %v2029, 0
        %v2049 = vunpack.c.l.b16 %v2013
        %v2050 = vunpack.c.l.b16 %v2014
        %v2051 = vunpack.c.l.b16 %v2015
        %v2052 = vunpack.c.l.b16 %v2016
        %v2053 = vunpack.c.l.b16 %v2017
        %v2054 = vunpack.c.l.b16 %v2018
        %v2055 = vunpack.c.l.b16 %v2019
        %v2056 = vunpack.c.l.b16 %v2020
        %v2057 = vunpack.c.l.b16 %v2021
        %v2058 = vunpack.c.l.b16 %v2022
        %v2059 = vunpack.c.l.b16 %v2023
        %v2060 = vunpack.c.l.b16 %v2024
        %v2061 = vunpack.c.l.b16 %v2025
        %v2062 = vunpack.c.l.b16 %v2026
        %v2063 = vunpack.c.l.b16 %v2027
        %v2064 = vunpack.c.l.b16 %v2028
        %v2065 = vpack.c.b16 %v2050, %v2049
        %v2066 = vpack.c.b16 %v2052, %v2051
        %v2067 = vpack.c.b16 %v2054, %v2053
        %v2068 = vpack.c.b16 %v2056, %v2055
        %v2069 = vpack.c.b16 %v2058, %v2057
        %v2070 = vpack.c.b16 %v2060, %v2059
        %v2071 = vpack.c.b16 %v2062, %v2061
        %v2072 = vpack.c.b16 %v2064, %v2063
        %2081 = vmatpush.bf16.msra.mxu0 %v2072
        %2082 = vmatpush.bf16.msra.mxu0 %v2071
        %2083 = vmatpush.bf16.msra.mxu0 %v2070
        %2084 = vmatpush.bf16.msra.mxu0 %v2069
        %2085 = vmatpush.bf16.msra.mxu0 %v2068
        %2086 = vmatpush.bf16.msra.mxu0 %v2067
        %2087 = vmatpush.bf16.msra.mxu0 %v2066
        %2088 = vmatpush.bf16.msra.mxu0 %v2065
        %2089 = vmatmul.bf16.gmra.mxu0 %v1997
        %v2090 = vpop.f32.mrf.mxu0
        %v2091 = vadd.f32 %v2031, %v2090
        %v2092 = vpop.f32.mrf.mxu0
        %v2093 = vadd.f32 %v2031, %v2092
        %2094 = vmatmul.bf16.gmra.mxu0 %v1998
        %v2095 = vpop.f32.mrf.mxu0
        %v2096 = vadd.f32 %v2031, %v2095
        %v2097 = vpop.f32.mrf.mxu0
        %v2098 = vadd.f32 %v2031, %v2097
        %2099 = vmatmul.bf16.gmra.mxu0 %v1999
        %v2100 = vpop.f32.mrf.mxu0
        %v2101 = vadd.f32 %v2031, %v2100
        %v2102 = vpop.f32.mrf.mxu0
        %v2103 = vadd.f32 %v2031, %v2102
        %2104 = vmatmul.bf16.gmra.mxu0 %v2000
        %v2105 = vpop.f32.mrf.mxu0
        %v2106 = vadd.f32 %v2031, %v2105
        %v2107 = vpop.f32.mrf.mxu0
        %v2108 = vadd.f32 %v2031, %v2107
        %2109 = vmatmul.bf16.gmra.mxu0 %v2001
        %v2110 = vpop.f32.mrf.mxu0
        %v2111 = vadd.f32 %v2031, %v2110
        %v2112 = vpop.f32.mrf.mxu0
        %v2113 = vadd.f32 %v2031, %v2112
        %2114 = vmatmul.bf16.gmra.mxu0 %v2002
        %v2115 = vpop.f32.mrf.mxu0
        %v2116 = vadd.f32 %v2031, %v2115
        %v2117 = vpop.f32.mrf.mxu0
        %v2118 = vadd.f32 %v2031, %v2117
        %2119 = vmatmul.bf16.gmra.mxu0 %v2003
        %v2120 = vpop.f32.mrf.mxu0
        %v2121 = vadd.f32 %v2031, %v2120
        %v2122 = vpop.f32.mrf.mxu0
        %v2123 = vadd.f32 %v2031, %v2122
        %2124 = vmatmul.bf16.gmra.mxu0 %v2004
        %v2125 = vpop.f32.mrf.mxu0
        %v2126 = vadd.f32 %v2031, %v2125
        %v2127 = vpop.f32.mrf.mxu0
        %v2128 = vadd.f32 %v2031, %v2127
        %2129 = vmatmul.bf16.gmra.mxu0 %v2005
        %v2130 = vpop.f32.mrf.mxu0
        %v2131 = vadd.f32 %v2031, %v2130
        %v2132 = vpop.f32.mrf.mxu0
        %v2133 = vadd.f32 %v2031, %v2132
        %2134 = vmatmul.bf16.gmra.mxu0 %v2006
        %v2135 = vpop.f32.mrf.mxu0
        %v2136 = vadd.f32 %v2031, %v2135
        %v2137 = vpop.f32.mrf.mxu0
        %v2138 = vadd.f32 %v2031, %v2137
        %2139 = vmatmul.bf16.gmra.mxu0 %v2007
        %v2140 = vpop.f32.mrf.mxu0
        %v2141 = vadd.f32 %v2031, %v2140
        %v2142 = vpop.f32.mrf.mxu0
        %v2143 = vadd.f32 %v2031, %v2142
        %2144 = vmatmul.bf16.gmra.mxu0 %v2008
        %v2145 = vpop.f32.mrf.mxu0
        %v2146 = vadd.f32 %v2031, %v2145
        %v2147 = vpop.f32.mrf.mxu0
        %v2148 = vadd.f32 %v2031, %v2147
        %2149 = vmatmul.bf16.gmra.mxu0 %v2009
        %v2150 = vpop.f32.mrf.mxu0
        %v2151 = vadd.f32 %v2031, %v2150
        %v2152 = vpop.f32.mrf.mxu0
        %v2153 = vadd.f32 %v2031, %v2152
        %2154 = vmatmul.bf16.gmra.mxu0 %v2010
        %v2155 = vpop.f32.mrf.mxu0
        %v2156 = vadd.f32 %v2031, %v2155
        %v2157 = vpop.f32.mrf.mxu0
        %v2158 = vadd.f32 %v2031, %v2157
        %2159 = vmatmul.bf16.gmra.mxu0 %v2011
        %v2160 = vpop.f32.mrf.mxu0
        %v2161 = vadd.f32 %v2031, %v2160
        %v2162 = vpop.f32.mrf.mxu0
        %v2163 = vadd.f32 %v2031, %v2162
        %2164 = vmatmul.bf16.gmra.mxu0 %v2012
        %v2165 = vpop.f32.mrf.mxu0
        %v2166 = vadd.f32 %v2031, %v2165
        %v2167 = vpop.f32.mrf.mxu0
        %v2168 = vadd.f32 %v2031, %v2167
        %2169 = vdwg.mxu0
        %v2170 = vmax.f32 %v2091, 0.0
        %v2171 = vmax.f32 %v2093, 0.0
        %v2172 = vmax.f32 %v2096, 0.0
        %v2173 = vmax.f32 %v2098, 0.0
        %v2174 = vmax.f32 %v2101, 0.0
        %v2175 = vmax.f32 %v2103, 0.0
        %v2176 = vmax.f32 %v2106, 0.0
        %v2177 = vmax.f32 %v2108, 0.0
        %v2178 = vmax.f32 %v2111, 0.0
        %v2179 = vmax.f32 %v2113, 0.0
        %v2180 = vmax.f32 %v2116, 0.0
        %v2181 = vmax.f32 %v2118, 0.0
        %v2182 = vmax.f32 %v2121, 0.0
        %v2183 = vmax.f32 %v2123, 0.0
        %v2184 = vmax.f32 %v2126, 0.0
        %v2185 = vmax.f32 %v2128, 0.0
        %v2186 = vmax.f32 %v2131, 0.0
        %v2187 = vmax.f32 %v2133, 0.0
        %v2188 = vmax.f32 %v2136, 0.0
        %v2189 = vmax.f32 %v2138, 0.0
        %v2190 = vmax.f32 %v2141, 0.0
        %v2191 = vmax.f32 %v2143, 0.0
        %v2192 = vmax.f32 %v2146, 0.0
        %v2193 = vmax.f32 %v2148, 0.0
        %v2194 = vmax.f32 %v2151, 0.0
        %v2195 = vmax.f32 %v2153, 0.0
        %v2196 = vmax.f32 %v2156, 0.0
        %v2197 = vmax.f32 %v2158, 0.0
        %v2198 = vmax.f32 %v2161, 0.0
        %v2199 = vmax.f32 %v2163, 0.0
        %v2200 = vmax.f32 %v2166, 0.0
        %v2201 = vmax.f32 %v2168, 0.0
        %v2202 = vpack.c.bf16 %v2171, %v2170
        %v2203 = vpack.c.bf16 %v2173, %v2172
        %v2204 = vpack.c.bf16 %v2175, %v2174
        %v2205 = vpack.c.bf16 %v2177, %v2176
        %v2206 = vpack.c.bf16 %v2179, %v2178
        %v2207 = vpack.c.bf16 %v2181, %v2180
        %v2208 = vpack.c.bf16 %v2183, %v2182
        %v2209 = vpack.c.bf16 %v2185, %v2184
        %v2210 = vpack.c.bf16 %v2187, %v2186
        %v2211 = vpack.c.bf16 %v2189, %v2188
        %v2212 = vpack.c.bf16 %v2191, %v2190
        %v2213 = vpack.c.bf16 %v2193, %v2192
        %v2214 = vpack.c.bf16 %v2195, %v2194
        %v2215 = vpack.c.bf16 %v2197, %v2196
        %v2216 = vpack.c.bf16 %v2199, %v2198
        %v2217 = vpack.c.bf16 %v2201, %v2200
        %v2218 = vld [vmem:[#allocation13] sm:$0xf]
        %v2219 = vld [vmem:[#allocation13 + $0x4] sm:$0xf]
        %v2220 = vld [vmem:[#allocation13 + $0x8] sm:$0xf]
        %v2221 = vld [vmem:[#allocation13 + $0xc] sm:$0xf]
        %v2222 = vld [vmem:[#allocation13 + $0x10] sm:$0xf]
        %v2223 = vld [vmem:[#allocation13 + $0x14] sm:$0xf]
        %v2224 = vld [vmem:[#allocation13 + $0x18] sm:$0xf]
        %v2225 = vld [vmem:[#allocation13 + $0x1c] sm:$0xf]
        %v2226 = vld [vmem:[#allocation13 + $0x20] sm:$0xf]
        %v2227 = vld [vmem:[#allocation13 + $0x24] sm:$0xf]
        %v2228 = vld [vmem:[#allocation13 + $0x28] sm:$0xf]
        %v2229 = vld [vmem:[#allocation13 + $0x2c] sm:$0xf]
        %v2230 = vld [vmem:[#allocation13 + $0x30] sm:$0xf]
        %v2231 = vld [vmem:[#allocation13 + $0x34] sm:$0xf]
        %v2232 = vld [vmem:[#allocation13 + $0x38] sm:$0xf]
        %v2233 = vld [vmem:[#allocation13 + $0x3c] sm:$0xf]
        %v2234 = vld [vmem:[%s12] sm:$0x1]
        %v2236 = vperm.slane %v2234, 0
        %v2254 = vunpack.c.l.b16 %v2218
        %v2255 = vunpack.c.l.b16 %v2219
        %v2256 = vunpack.c.l.b16 %v2220
        %v2257 = vunpack.c.l.b16 %v2221
        %v2258 = vunpack.c.l.b16 %v2222
        %v2259 = vunpack.c.l.b16 %v2223
        %v2260 = vunpack.c.l.b16 %v2224
        %v2261 = vunpack.c.l.b16 %v2225
        %v2262 = vunpack.c.l.b16 %v2226
        %v2263 = vunpack.c.l.b16 %v2227
        %v2264 = vunpack.c.l.b16 %v2228
        %v2265 = vunpack.c.l.b16 %v2229
        %v2266 = vunpack.c.l.b16 %v2230
        %v2267 = vunpack.c.l.b16 %v2231
        %v2268 = vunpack.c.l.b16 %v2232
        %v2269 = vunpack.c.l.b16 %v2233
        %v2270 = vpack.c.b16 %v2255, %v2254
        %v2271 = vpack.c.b16 %v2257, %v2256
        %v2272 = vpack.c.b16 %v2259, %v2258
        %v2273 = vpack.c.b16 %v2261, %v2260
        %v2274 = vpack.c.b16 %v2263, %v2262
        %v2275 = vpack.c.b16 %v2265, %v2264
        %v2276 = vpack.c.b16 %v2267, %v2266
        %v2277 = vpack.c.b16 %v2269, %v2268
        %2286 = vmatpush.bf16.msra.mxu0 %v2277
        %2287 = vmatpush.bf16.msra.mxu0 %v2276
        %2288 = vmatpush.bf16.msra.mxu0 %v2275
        %2289 = vmatpush.bf16.msra.mxu0 %v2274
        %2290 = vmatpush.bf16.msra.mxu0 %v2273
        %2291 = vmatpush.bf16.msra.mxu0 %v2272
        %2292 = vmatpush.bf16.msra.mxu0 %v2271
        %2293 = vmatpush.bf16.msra.mxu0 %v2270
        %2294 = vmatmul.bf16.gmra.mxu0 %v2202
        %v2295 = vpop.f32.mrf.mxu0
        %v2296 = vadd.f32 %v2236, %v2295
        %v2297 = vpop.f32.mrf.mxu0
        %v2298 = vadd.f32 %v2236, %v2297
        %2299 = vmatmul.bf16.gmra.mxu0 %v2203
        %v2300 = vpop.f32.mrf.mxu0
        %v2301 = vadd.f32 %v2236, %v2300
        %v2302 = vpop.f32.mrf.mxu0
        %v2303 = vadd.f32 %v2236, %v2302
        %2304 = vmatmul.bf16.gmra.mxu0 %v2204
        %v2305 = vpop.f32.mrf.mxu0
        %v2306 = vadd.f32 %v2236, %v2305
        %v2307 = vpop.f32.mrf.mxu0
        %v2308 = vadd.f32 %v2236, %v2307
        %2309 = vmatmul.bf16.gmra.mxu0 %v2205
        %v2310 = vpop.f32.mrf.mxu0
        %v2311 = vadd.f32 %v2236, %v2310
        %v2312 = vpop.f32.mrf.mxu0
        %v2313 = vadd.f32 %v2236, %v2312
        %2314 = vmatmul.bf16.gmra.mxu0 %v2206
        %v2315 = vpop.f32.mrf.mxu0
        %v2316 = vadd.f32 %v2236, %v2315
        %v2317 = vpop.f32.mrf.mxu0
        %v2318 = vadd.f32 %v2236, %v2317
        %2319 = vmatmul.bf16.gmra.mxu0 %v2207
        %v2320 = vpop.f32.mrf.mxu0
        %v2321 = vadd.f32 %v2236, %v2320
        %v2322 = vpop.f32.mrf.mxu0
        %v2323 = vadd.f32 %v2236, %v2322
        %2324 = vmatmul.bf16.gmra.mxu0 %v2208
        %v2325 = vpop.f32.mrf.mxu0
        %v2326 = vadd.f32 %v2236, %v2325
        %v2327 = vpop.f32.mrf.mxu0
        %v2328 = vadd.f32 %v2236, %v2327
        %2329 = vmatmul.bf16.gmra.mxu0 %v2209
        %v2330 = vpop.f32.mrf.mxu0
        %v2331 = vadd.f32 %v2236, %v2330
        %v2332 = vpop.f32.mrf.mxu0
        %v2333 = vadd.f32 %v2236, %v2332
        %2334 = vmatmul.bf16.gmra.mxu0 %v2210
        %v2335 = vpop.f32.mrf.mxu0
        %v2336 = vadd.f32 %v2236, %v2335
        %v2337 = vpop.f32.mrf.mxu0
        %v2338 = vadd.f32 %v2236, %v2337
        %2339 = vmatmul.bf16.gmra.mxu0 %v2211
        %v2340 = vpop.f32.mrf.mxu0
        %v2341 = vadd.f32 %v2236, %v2340
        %v2342 = vpop.f32.mrf.mxu0
        %v2343 = vadd.f32 %v2236, %v2342
        %2344 = vmatmul.bf16.gmra.mxu0 %v2212
        %v2345 = vpop.f32.mrf.mxu0
        %v2346 = vadd.f32 %v2236, %v2345
        %v2347 = vpop.f32.mrf.mxu0
        %v2348 = vadd.f32 %v2236, %v2347
        %2349 = vmatmul.bf16.gmra.mxu0 %v2213
        %v2350 = vpop.f32.mrf.mxu0
        %v2351 = vadd.f32 %v2236, %v2350
        %v2352 = vpop.f32.mrf.mxu0
        %v2353 = vadd.f32 %v2236, %v2352
        %2354 = vmatmul.bf16.gmra.mxu0 %v2214
        %v2355 = vpop.f32.mrf.mxu0
        %v2356 = vadd.f32 %v2236, %v2355
        %v2357 = vpop.f32.mrf.mxu0
        %v2358 = vadd.f32 %v2236, %v2357
        %2359 = vmatmul.bf16.gmra.mxu0 %v2215
        %v2360 = vpop.f32.mrf.mxu0
        %v2361 = vadd.f32 %v2236, %v2360
        %v2362 = vpop.f32.mrf.mxu0
        %v2363 = vadd.f32 %v2236, %v2362
        %2364 = vmatmul.bf16.gmra.mxu0 %v2216
        %v2365 = vpop.f32.mrf.mxu0
        %v2366 = vadd.f32 %v2236, %v2365
        %v2367 = vpop.f32.mrf.mxu0
        %v2368 = vadd.f32 %v2236, %v2367
        %2369 = vmatmul.bf16.gmra.mxu0 %v2217
        %v2370 = vpop.f32.mrf.mxu0
        %v2371 = vadd.f32 %v2236, %v2370
        %v2372 = vpop.f32.mrf.mxu0
        %v2373 = vadd.f32 %v2236, %v2372
        %2374 = vdwg.mxu0
        %v2375 = vmax.f32 %v2296, 0.0
        %v2376 = vmax.f32 %v2298, 0.0
        %v2377 = vmax.f32 %v2301, 0.0
        %v2378 = vmax.f32 %v2303, 0.0
        %v2379 = vmax.f32 %v2306, 0.0
        %v2380 = vmax.f32 %v2308, 0.0
        %v2381 = vmax.f32 %v2311, 0.0
        %v2382 = vmax.f32 %v2313, 0.0
        %v2383 = vmax.f32 %v2316, 0.0
        %v2384 = vmax.f32 %v2318, 0.0
        %v2385 = vmax.f32 %v2321, 0.0
        %v2386 = vmax.f32 %v2323, 0.0
        %v2387 = vmax.f32 %v2326, 0.0
        %v2388 = vmax.f32 %v2328, 0.0
        %v2389 = vmax.f32 %v2331, 0.0
        %v2390 = vmax.f32 %v2333, 0.0
        %v2391 = vmax.f32 %v2336, 0.0
        %v2392 = vmax.f32 %v2338, 0.0
        %v2393 = vmax.f32 %v2341, 0.0
        %v2394 = vmax.f32 %v2343, 0.0
        %v2395 = vmax.f32 %v2346, 0.0
        %v2396 = vmax.f32 %v2348, 0.0
        %v2397 = vmax.f32 %v2351, 0.0
        %v2398 = vmax.f32 %v2353, 0.0
        %v2399 = vmax.f32 %v2356, 0.0
        %v2400 = vmax.f32 %v2358, 0.0
        %v2401 = vmax.f32 %v2361, 0.0
        %v2402 = vmax.f32 %v2363, 0.0
        %v2403 = vmax.f32 %v2366, 0.0
        %v2404 = vmax.f32 %v2368, 0.0
        %v2405 = vmax.f32 %v2371, 0.0
        %v2406 = vmax.f32 %v2373, 0.0
        %v2407 = vpack.c.bf16 %v2376, %v2375
        %v2408 = vpack.c.bf16 %v2378, %v2377
        %v2409 = vpack.c.bf16 %v2380, %v2379
        %v2410 = vpack.c.bf16 %v2382, %v2381
        %v2411 = vpack.c.bf16 %v2384, %v2383
        %v2412 = vpack.c.bf16 %v2386, %v2385
        %v2413 = vpack.c.bf16 %v2388, %v2387
        %v2414 = vpack.c.bf16 %v2390, %v2389
        %v2415 = vpack.c.bf16 %v2392, %v2391
        %v2416 = vpack.c.bf16 %v2394, %v2393
        %v2417 = vpack.c.bf16 %v2396, %v2395
        %v2418 = vpack.c.bf16 %v2398, %v2397
        %v2419 = vpack.c.bf16 %v2400, %v2399
        %v2420 = vpack.c.bf16 %v2402, %v2401
        %v2421 = vpack.c.bf16 %v2404, %v2403
        %v2422 = vpack.c.bf16 %v2406, %v2405
        %v2423 = vld [vmem:[#allocation14] sm:$0xf]
        %v2424 = vld [vmem:[#allocation14 + $0x4] sm:$0xf]
        %v2425 = vld [vmem:[#allocation14 + $0x8] sm:$0xf]
        %v2426 = vld [vmem:[#allocation14 + $0xc] sm:$0xf]
        %v2427 = vld [vmem:[#allocation14 + $0x10] sm:$0xf]
        %v2428 = vld [vmem:[#allocation14 + $0x14] sm:$0xf]
        %v2429 = vld [vmem:[#allocation14 + $0x18] sm:$0xf]
        %v2430 = vld [vmem:[#allocation14 + $0x1c] sm:$0xf]
        %v2431 = vld [vmem:[#allocation14 + $0x20] sm:$0xf]
        %v2432 = vld [vmem:[#allocation14 + $0x24] sm:$0xf]
        %v2433 = vld [vmem:[#allocation14 + $0x28] sm:$0xf]
        %v2434 = vld [vmem:[#allocation14 + $0x2c] sm:$0xf]
        %v2435 = vld [vmem:[#allocation14 + $0x30] sm:$0xf]
        %v2436 = vld [vmem:[#allocation14 + $0x34] sm:$0xf]
        %v2437 = vld [vmem:[#allocation14 + $0x38] sm:$0xf]
        %v2438 = vld [vmem:[#allocation14 + $0x3c] sm:$0xf]
        %v2439 = vld [vmem:[%s14] sm:$0x1]
        %v2441 = vperm.slane %v2439, 0
        %v2459 = vunpack.c.l.b16 %v2423
        %v2460 = vunpack.c.l.b16 %v2424
        %v2461 = vunpack.c.l.b16 %v2425
        %v2462 = vunpack.c.l.b16 %v2426
        %v2463 = vunpack.c.l.b16 %v2427
        %v2464 = vunpack.c.l.b16 %v2428
        %v2465 = vunpack.c.l.b16 %v2429
        %v2466 = vunpack.c.l.b16 %v2430
        %v2467 = vunpack.c.l.b16 %v2431
        %v2468 = vunpack.c.l.b16 %v2432
        %v2469 = vunpack.c.l.b16 %v2433
        %v2470 = vunpack.c.l.b16 %v2434
        %v2471 = vunpack.c.l.b16 %v2435
        %v2472 = vunpack.c.l.b16 %v2436
        %v2473 = vunpack.c.l.b16 %v2437
        %v2474 = vunpack.c.l.b16 %v2438
        %v2475 = vpack.c.b16 %v2460, %v2459
        %v2476 = vpack.c.b16 %v2462, %v2461
        %v2477 = vpack.c.b16 %v2464, %v2463
        %v2478 = vpack.c.b16 %v2466, %v2465
        %v2479 = vpack.c.b16 %v2468, %v2467
        %v2480 = vpack.c.b16 %v2470, %v2469
        %v2481 = vpack.c.b16 %v2472, %v2471
        %v2482 = vpack.c.b16 %v2474, %v2473
        %2491 = vmatpush.bf16.msra.mxu0 %v2482
        %2492 = vmatpush.bf16.msra.mxu0 %v2481
        %2493 = vmatpush.bf16.msra.mxu0 %v2480
        %2494 = vmatpush.bf16.msra.mxu0 %v2479
        %2495 = vmatpush.bf16.msra.mxu0 %v2478
        %2496 = vmatpush.bf16.msra.mxu0 %v2477
        %2497 = vmatpush.bf16.msra.mxu0 %v2476
        %2498 = vmatpush.bf16.msra.mxu0 %v2475
        %2499 = vmatmul.bf16.gmra.mxu0 %v2407
        %v2500 = vpop.f32.mrf.mxu0
        %v2501 = vadd.f32 %v2441, %v2500
        %v2502 = vpop.f32.mrf.mxu0
        %v2503 = vadd.f32 %v2441, %v2502
        %2504 = vmatmul.bf16.gmra.mxu0 %v2408
        %v2505 = vpop.f32.mrf.mxu0
        %v2506 = vadd.f32 %v2441, %v2505
        %v2507 = vpop.f32.mrf.mxu0
        %v2508 = vadd.f32 %v2441, %v2507
        %2509 = vmatmul.bf16.gmra.mxu0 %v2409
        %v2510 = vpop.f32.mrf.mxu0
        %v2511 = vadd.f32 %v2441, %v2510
        %v2512 = vpop.f32.mrf.mxu0
        %v2513 = vadd.f32 %v2441, %v2512
        %2514 = vmatmul.bf16.gmra.mxu0 %v2410
        %v2515 = vpop.f32.mrf.mxu0
        %v2516 = vadd.f32 %v2441, %v2515
        %v2517 = vpop.f32.mrf.mxu0
        %v2518 = vadd.f32 %v2441, %v2517
        %2519 = vmatmul.bf16.gmra.mxu0 %v2411
        %v2520 = vpop.f32.mrf.mxu0
        %v2521 = vadd.f32 %v2441, %v2520
        %v2522 = vpop.f32.mrf.mxu0
        %v2523 = vadd.f32 %v2441, %v2522
        %2524 = vmatmul.bf16.gmra.mxu0 %v2412
        %v2525 = vpop.f32.mrf.mxu0
        %v2526 = vadd.f32 %v2441, %v2525
        %v2527 = vpop.f32.mrf.mxu0
        %v2528 = vadd.f32 %v2441, %v2527
        %2529 = vmatmul.bf16.gmra.mxu0 %v2413
        %v2530 = vpop.f32.mrf.mxu0
        %v2531 = vadd.f32 %v2441, %v2530
        %v2532 = vpop.f32.mrf.mxu0
        %v2533 = vadd.f32 %v2441, %v2532
        %2534 = vmatmul.bf16.gmra.mxu0 %v2414
        %v2535 = vpop.f32.mrf.mxu0
        %v2536 = vadd.f32 %v2441, %v2535
        %v2537 = vpop.f32.mrf.mxu0
        %v2538 = vadd.f32 %v2441, %v2537
        %2539 = vmatmul.bf16.gmra.mxu0 %v2415
        %v2540 = vpop.f32.mrf.mxu0
        %v2541 = vadd.f32 %v2441, %v2540
        %v2542 = vpop.f32.mrf.mxu0
        %v2543 = vadd.f32 %v2441, %v2542
        %2544 = vmatmul.bf16.gmra.mxu0 %v2416
        %v2545 = vpop.f32.mrf.mxu0
        %v2546 = vadd.f32 %v2441, %v2545
        %v2547 = vpop.f32.mrf.mxu0
        %v2548 = vadd.f32 %v2441, %v2547
        %2549 = vmatmul.bf16.gmra.mxu0 %v2417
        %v2550 = vpop.f32.mrf.mxu0
        %v2551 = vadd.f32 %v2441, %v2550
        %v2552 = vpop.f32.mrf.mxu0
        %v2553 = vadd.f32 %v2441, %v2552
        %2554 = vmatmul.bf16.gmra.mxu0 %v2418
        %v2555 = vpop.f32.mrf.mxu0
        %v2556 = vadd.f32 %v2441, %v2555
        %v2557 = vpop.f32.mrf.mxu0
        %v2558 = vadd.f32 %v2441, %v2557
        %2559 = vmatmul.bf16.gmra.mxu0 %v2419
        %v2560 = vpop.f32.mrf.mxu0
        %v2561 = vadd.f32 %v2441, %v2560
        %v2562 = vpop.f32.mrf.mxu0
        %v2563 = vadd.f32 %v2441, %v2562
        %2564 = vmatmul.bf16.gmra.mxu0 %v2420
        %v2565 = vpop.f32.mrf.mxu0
        %v2566 = vadd.f32 %v2441, %v2565
        %v2567 = vpop.f32.mrf.mxu0
        %v2568 = vadd.f32 %v2441, %v2567
        %2569 = vmatmul.bf16.gmra.mxu0 %v2421
        %v2570 = vpop.f32.mrf.mxu0
        %v2571 = vadd.f32 %v2441, %v2570
        %v2572 = vpop.f32.mrf.mxu0
        %v2573 = vadd.f32 %v2441, %v2572
        %2574 = vmatmul.bf16.gmra.mxu0 %v2422
        %v2575 = vpop.f32.mrf.mxu0
        %v2576 = vadd.f32 %v2441, %v2575
        %v2577 = vpop.f32.mrf.mxu0
        %v2578 = vadd.f32 %v2441, %v2577
        %2579 = vdwg.mxu0
        %v2580 = vmax.f32 %v2501, 0.0
        %v2581 = vmax.f32 %v2503, 0.0
        %v2582 = vmax.f32 %v2506, 0.0
        %v2583 = vmax.f32 %v2508, 0.0
        %v2584 = vmax.f32 %v2511, 0.0
        %v2585 = vmax.f32 %v2513, 0.0
        %v2586 = vmax.f32 %v2516, 0.0
        %v2587 = vmax.f32 %v2518, 0.0
        %v2588 = vmax.f32 %v2521, 0.0
        %v2589 = vmax.f32 %v2523, 0.0
        %v2590 = vmax.f32 %v2526, 0.0
        %v2591 = vmax.f32 %v2528, 0.0
        %v2592 = vmax.f32 %v2531, 0.0
        %v2593 = vmax.f32 %v2533, 0.0
        %v2594 = vmax.f32 %v2536, 0.0
        %v2595 = vmax.f32 %v2538, 0.0
        %v2596 = vmax.f32 %v2541, 0.0
        %v2597 = vmax.f32 %v2543, 0.0
        %v2598 = vmax.f32 %v2546, 0.0
        %v2599 = vmax.f32 %v2548, 0.0
        %v2600 = vmax.f32 %v2551, 0.0
        %v2601 = vmax.f32 %v2553, 0.0
        %v2602 = vmax.f32 %v2556, 0.0
        %v2603 = vmax.f32 %v2558, 0.0
        %v2604 = vmax.f32 %v2561, 0.0
        %v2605 = vmax.f32 %v2563, 0.0
        %v2606 = vmax.f32 %v2566, 0.0
        %v2607 = vmax.f32 %v2568, 0.0
        %v2608 = vmax.f32 %v2571, 0.0
        %v2609 = vmax.f32 %v2573, 0.0
        %v2610 = vmax.f32 %v2576, 0.0
        %v2611 = vmax.f32 %v2578, 0.0
        %v2612 = vpack.c.bf16 %v2581, %v2580
        %v2613 = vpack.c.bf16 %v2583, %v2582
        %v2614 = vpack.c.bf16 %v2585, %v2584
        %v2615 = vpack.c.bf16 %v2587, %v2586
        %v2616 = vpack.c.bf16 %v2589, %v2588
        %v2617 = vpack.c.bf16 %v2591, %v2590
        %v2618 = vpack.c.bf16 %v2593, %v2592
        %v2619 = vpack.c.bf16 %v2595, %v2594
        %v2620 = vpack.c.bf16 %v2597, %v2596
        %v2621 = vpack.c.bf16 %v2599, %v2598
        %v2622 = vpack.c.bf16 %v2601, %v2600
        %v2623 = vpack.c.bf16 %v2603, %v2602
        %v2624 = vpack.c.bf16 %v2605, %v2604
        %v2625 = vpack.c.bf16 %v2607, %v2606
        %v2626 = vpack.c.bf16 %v2609, %v2608
        %v2627 = vpack.c.bf16 %v2611, %v2610
        %v2628 = vld [vmem:[#allocation16] sm:$0xf]
        %v2629 = vld [vmem:[#allocation16 + $0x4] sm:$0xf]
        %v2630 = vld [vmem:[#allocation16 + $0x8] sm:$0xf]
        %v2631 = vld [vmem:[#allocation16 + $0xc] sm:$0xf]
        %v2632 = vld [vmem:[#allocation16 + $0x10] sm:$0xf]
        %v2633 = vld [vmem:[#allocation16 + $0x14] sm:$0xf]
        %v2634 = vld [vmem:[#allocation16 + $0x18] sm:$0xf]
        %v2635 = vld [vmem:[#allocation16 + $0x1c] sm:$0xf]
        %v2636 = vld [vmem:[#allocation16 + $0x20] sm:$0xf]
        %v2637 = vld [vmem:[#allocation16 + $0x24] sm:$0xf]
        %v2638 = vld [vmem:[#allocation16 + $0x28] sm:$0xf]
        %v2639 = vld [vmem:[#allocation16 + $0x2c] sm:$0xf]
        %v2640 = vld [vmem:[#allocation16 + $0x30] sm:$0xf]
        %v2641 = vld [vmem:[#allocation16 + $0x34] sm:$0xf]
        %v2642 = vld [vmem:[#allocation16 + $0x38] sm:$0xf]
        %v2643 = vld [vmem:[#allocation16 + $0x3c] sm:$0xf]
        %v2644 = vld [vmem:[%s16] sm:$0x1]
        %v2646 = vperm.slane %v2644, 0
        %v2664 = vunpack.c.l.b16 %v2628
        %v2665 = vunpack.c.l.b16 %v2629
        %v2666 = vunpack.c.l.b16 %v2630
        %v2667 = vunpack.c.l.b16 %v2631
        %v2668 = vunpack.c.l.b16 %v2632
        %v2669 = vunpack.c.l.b16 %v2633
        %v2670 = vunpack.c.l.b16 %v2634
        %v2671 = vunpack.c.l.b16 %v2635
        %v2672 = vunpack.c.l.b16 %v2636
        %v2673 = vunpack.c.l.b16 %v2637
        %v2674 = vunpack.c.l.b16 %v2638
        %v2675 = vunpack.c.l.b16 %v2639
        %v2676 = vunpack.c.l.b16 %v2640
        %v2677 = vunpack.c.l.b16 %v2641
        %v2678 = vunpack.c.l.b16 %v2642
        %v2679 = vunpack.c.l.b16 %v2643
        %v2680 = vpack.c.b16 %v2665, %v2664
        %v2681 = vpack.c.b16 %v2667, %v2666
        %v2682 = vpack.c.b16 %v2669, %v2668
        %v2683 = vpack.c.b16 %v2671, %v2670
        %v2684 = vpack.c.b16 %v2673, %v2672
        %v2685 = vpack.c.b16 %v2675, %v2674
        %v2686 = vpack.c.b16 %v2677, %v2676
        %v2687 = vpack.c.b16 %v2679, %v2678
        %2696 = vmatpush.bf16.msra.mxu0 %v2687
        %2697 = vmatpush.bf16.msra.mxu0 %v2686
        %2698 = vmatpush.bf16.msra.mxu0 %v2685
        %2699 = vmatpush.bf16.msra.mxu0 %v2684
        %2700 = vmatpush.bf16.msra.mxu0 %v2683
        %2701 = vmatpush.bf16.msra.mxu0 %v2682
        %2702 = vmatpush.bf16.msra.mxu0 %v2681
        %2703 = vmatpush.bf16.msra.mxu0 %v2680
        %2704 = vmatmul.bf16.gmra.mxu0 %v2612
        %v2705 = vpop.f32.mrf.mxu0
        %v2706 = vadd.f32 %v2646, %v2705
        %v2707 = vpop.f32.mrf.mxu0
        %v2708 = vadd.f32 %v2646, %v2707
        %2709 = vmatmul.bf16.gmra.mxu0 %v2613
        %v2710 = vpop.f32.mrf.mxu0
        %v2711 = vadd.f32 %v2646, %v2710
        %v2712 = vpop.f32.mrf.mxu0
        %v2713 = vadd.f32 %v2646, %v2712
        %2714 = vmatmul.bf16.gmra.mxu0 %v2614
        %v2715 = vpop.f32.mrf.mxu0
        %v2716 = vadd.f32 %v2646, %v2715
        %v2717 = vpop.f32.mrf.mxu0
        %v2718 = vadd.f32 %v2646, %v2717
        %2719 = vmatmul.bf16.gmra.mxu0 %v2615
        %v2720 = vpop.f32.mrf.mxu0
        %v2721 = vadd.f32 %v2646, %v2720
        %v2722 = vpop.f32.mrf.mxu0
        %v2723 = vadd.f32 %v2646, %v2722
        %2724 = vmatmul.bf16.gmra.mxu0 %v2616
        %v2725 = vpop.f32.mrf.mxu0
        %v2726 = vadd.f32 %v2646, %v2725
        %v2727 = vpop.f32.mrf.mxu0
        %v2728 = vadd.f32 %v2646, %v2727
        %2729 = vmatmul.bf16.gmra.mxu0 %v2617
        %v2730 = vpop.f32.mrf.mxu0
        %v2731 = vadd.f32 %v2646, %v2730
        %v2732 = vpop.f32.mrf.mxu0
        %v2733 = vadd.f32 %v2646, %v2732
        %2734 = vmatmul.bf16.gmra.mxu0 %v2618
        %v2735 = vpop.f32.mrf.mxu0
        %v2736 = vadd.f32 %v2646, %v2735
        %v2737 = vpop.f32.mrf.mxu0
        %v2738 = vadd.f32 %v2646, %v2737
        %2739 = vmatmul.bf16.gmra.mxu0 %v2619
        %v2740 = vpop.f32.mrf.mxu0
        %v2741 = vadd.f32 %v2646, %v2740
        %v2742 = vpop.f32.mrf.mxu0
        %v2743 = vadd.f32 %v2646, %v2742
        %2744 = vmatmul.bf16.gmra.mxu0 %v2620
        %v2745 = vpop.f32.mrf.mxu0
        %v2746 = vadd.f32 %v2646, %v2745
        %v2747 = vpop.f32.mrf.mxu0
        %v2748 = vadd.f32 %v2646, %v2747
        %2749 = vmatmul.bf16.gmra.mxu0 %v2621
        %v2750 = vpop.f32.mrf.mxu0
        %v2751 = vadd.f32 %v2646, %v2750
        %v2752 = vpop.f32.mrf.mxu0
        %v2753 = vadd.f32 %v2646, %v2752
        %2754 = vmatmul.bf16.gmra.mxu0 %v2622
        %v2755 = vpop.f32.mrf.mxu0
        %v2756 = vadd.f32 %v2646, %v2755
        %v2757 = vpop.f32.mrf.mxu0
        %v2758 = vadd.f32 %v2646, %v2757
        %2759 = vmatmul.bf16.gmra.mxu0 %v2623
        %v2760 = vpop.f32.mrf.mxu0
        %v2761 = vadd.f32 %v2646, %v2760
        %v2762 = vpop.f32.mrf.mxu0
        %v2763 = vadd.f32 %v2646, %v2762
        %2764 = vmatmul.bf16.gmra.mxu0 %v2624
        %v2765 = vpop.f32.mrf.mxu0
        %v2766 = vadd.f32 %v2646, %v2765
        %v2767 = vpop.f32.mrf.mxu0
        %v2768 = vadd.f32 %v2646, %v2767
        %2769 = vmatmul.bf16.gmra.mxu0 %v2625
        %v2770 = vpop.f32.mrf.mxu0
        %v2771 = vadd.f32 %v2646, %v2770
        %v2772 = vpop.f32.mrf.mxu0
        %v2773 = vadd.f32 %v2646, %v2772
        %2774 = vmatmul.bf16.gmra.mxu0 %v2626
        %v2775 = vpop.f32.mrf.mxu0
        %v2776 = vadd.f32 %v2646, %v2775
        %v2777 = vpop.f32.mrf.mxu0
        %v2778 = vadd.f32 %v2646, %v2777
        %2779 = vmatmul.bf16.gmra.mxu0 %v2627
        %v2780 = vpop.f32.mrf.mxu0
        %v2781 = vadd.f32 %v2646, %v2780
        %v2782 = vpop.f32.mrf.mxu0
        %v2783 = vadd.f32 %v2646, %v2782
        %2784 = vdwg.mxu0
        %2785 = vst [vmem:[%s738] sm:$0xff] %v2706
        %2786 = vst [vmem:[%s738 + $0x8] sm:$0xff] %v2708
        %2787 = vst [vmem:[%s738 + $0x10] sm:$0xff] %v2711
        %2788 = vst [vmem:[%s738 + $0x18] sm:$0xff] %v2713
        %2789 = vst [vmem:[%s738 + $0x20] sm:$0xff] %v2716
        %2790 = vst [vmem:[%s738 + $0x28] sm:$0xff] %v2718
        %2791 = vst [vmem:[%s738 + $0x30] sm:$0xff] %v2721
        %2792 = vst [vmem:[%s738 + $0x38] sm:$0xff] %v2723
        %2793 = vst [vmem:[%s738 + $0x40] sm:$0xff] %v2726
        %2794 = vst [vmem:[%s738 + $0x48] sm:$0xff] %v2728
        %2795 = vst [vmem:[%s738 + $0x50] sm:$0xff] %v2731
        %2796 = vst [vmem:[%s738 + $0x58] sm:$0xff] %v2733
        %2797 = vst [vmem:[%s738 + $0x60] sm:$0xff] %v2736
        %2798 = vst [vmem:[%s738 + $0x68] sm:$0xff] %v2738
        %2799 = vst [vmem:[%s738 + $0x70] sm:$0xff] %v2741
        %2800 = vst [vmem:[%s738 + $0x78] sm:$0xff] %v2743
        %2801 = vst [vmem:[%s738 + $0x80] sm:$0xff] %v2746
        %2802 = vst [vmem:[%s738 + $0x88] sm:$0xff] %v2748
        %2803 = vst [vmem:[%s738 + $0x90] sm:$0xff] %v2751
        %2804 = vst [vmem:[%s738 + $0x98] sm:$0xff] %v2753
        %2805 = vst [vmem:[%s738 + $0xa0] sm:$0xff] %v2756
        %2806 = vst [vmem:[%s738 + $0xa8] sm:$0xff] %v2758
        %2807 = vst [vmem:[%s738 + $0xb0] sm:$0xff] %v2761
        %2808 = vst [vmem:[%s738 + $0xb8] sm:$0xff] %v2763
        %2809 = vst [vmem:[%s738 + $0xc0] sm:$0xff] %v2766
        %2810 = vst [vmem:[%s738 + $0xc8] sm:$0xff] %v2768
        %2811 = vst [vmem:[%s738 + $0xd0] sm:$0xff] %v2771
        %2812 = vst [vmem:[%s738 + $0xd8] sm:$0xff] %v2773
        %2813 = vst [vmem:[%s738 + $0xe0] sm:$0xff] %v2776
        %2814 = vst [vmem:[%s738 + $0xe8] sm:$0xff] %v2778
        %2815 = vst [vmem:[%s738 + $0xf0] sm:$0xff] %v2781
        %2816 = vst [vmem:[%s738 + $0xf8] sm:$0xff] %v2783
        %s2817 = sand.u32 %s413, 1
        %s2818 = scalar_lea.sflag [#allocation4], %s2817
        %s2819 = sand.u32 %s413, 1
        %s2820 = smul.addr %s2819, 256
        %s2821 = scalar_lea.vmem [#allocation17], %s2820
        %s2822 = sand.u32 %s439, 1
        %s2823 = scalar_lea.sflag [#allocation19], %s2822
        %s2824 = sand.u32 %s439, 1
        %s2825 = smul.addr %s2824, 256
        %s2826 = scalar_lea.vmem [#allocation18], %s2825
        // Predicated region
        $region125: #{tpu_custom_call.1} parent=87 // pred_check
          %p2827 = pneg %p423
        $region126: #{tpu_custom_call.1} parent=87 // pred_check_branch
          %2829 = sbr.rel (%p2827) target = $region128
        $region127: #{tpu_custom_call.1} parent=87 // pred_region
          %s2830 = smul.u32 32, %s43
          %2832 = vsyncadd %s2818, 0
          %s2833 = smul.addr %s2830, 8
          %s2834 = scalar_lea.hbm %s17, %s2833
          %s2835 = sshll.u32 %s2821, 4
          %s2836 = int_to_ptr.vmem [resolvable:$true] %s2835
          %s2837 = sshll.u32 %s2834, 4
          %s2838 = int_to_ptr.hbm [resolvable:$true] %s2837
          %2843 = dma.vmem_to_hbm [thread:$0]  %s2836, 4096, %s2838, %s2818, 128, 128, 8
        $region128: #{tpu_custom_call.1} parent=87 // pred_fallthru
          _
        // Predicated region
        $region129: #{tpu_custom_call.1} parent=87 // pred_check
          %p2844 = pneg %p449
        $region130: #{tpu_custom_call.1} parent=87 // pred_check_branch
          %2846 = sbr.rel (%p2844) target = $region132
        $region131: #{tpu_custom_call.1} parent=87 // pred_region
          %s2847 = smul.u32 32, %s43
          %2849 = vsyncadd %s2823, 0
          %s2850 = smul.addr %s2847, 8
          %s2851 = scalar_lea.hbm %s18, %s2850
          %s2852 = sshll.u32 %s2826, 4
          %s2853 = int_to_ptr.vmem [resolvable:$true] %s2852
          %s2854 = sshll.u32 %s2851, 4
          %s2855 = int_to_ptr.hbm [resolvable:$true] %s2854
          %2860 = dma.vmem_to_hbm [thread:$0]  %s2853, 4096, %s2855, %s2823, 128, 128, 8
        $region132: #{tpu_custom_call.1} parent=87 // pred_fallthru
          _
      $region88: #{tpu_custom_call.1} parent=5 // pred_fallthru
        _
      %p2861 = scmp.le.s32.totalorder 2, %s38
      // Predicated region
      $region133: #{tpu_custom_call.1} parent=5 // pred_check
        %p2862 = pneg %p2861
      $region134: #{tpu_custom_call.1} parent=5 // pred_check_branch
        %2864 = sbr.rel (%p2862) target = $region136
      $region135: #{tpu_custom_call.1} parent=5 // pred_region
        %s2865 = ssub.s32 %s38, 2
        // Predicated region
        $region137: #{tpu_custom_call.1} parent=135 // pred_check
          %p2866 = pneg %p429
        $region138: #{tpu_custom_call.1} parent=135 // pred_check_branch
          %2868 = sbr.rel (%p2866) target = $region140
        $region139: #{tpu_custom_call.1} parent=135 // pred_region
          %s2869 = sand.u32 %s414, 1
          %s2870 = scalar_lea.sflag [#allocation4], %s2869
          %s2871 = sand.u32 %s414, 1
          %s2872 = smul.addr %s2871, 256
          %s2873 = scalar_lea.vmem [#allocation17], %s2872
          %2875 = dma.done %s2870, 4096
        $region140: #{tpu_custom_call.1} parent=135 // pred_fallthru
          _
        // Predicated region
        $region141: #{tpu_custom_call.1} parent=135 // pred_check
          %p2876 = pneg %p455
        $region142: #{tpu_custom_call.1} parent=135 // pred_check_branch
          %2878 = sbr.rel (%p2876) target = $region144
        $region143: #{tpu_custom_call.1} parent=135 // pred_region
          %s2879 = sand.u32 %s440, 1
          %s2880 = scalar_lea.sflag [#allocation19], %s2879
          %s2881 = sand.u32 %s440, 1
          %s2882 = smul.addr %s2881, 256
          %s2883 = scalar_lea.vmem [#allocation18], %s2882
          %2885 = dma.done %s2880, 4096
        $region144: #{tpu_custom_call.1} parent=135 // pred_fallthru
          _
      $region136: #{tpu_custom_call.1} parent=5 // pred_fallthru
        _
    $region6: #{tpu_custom_call.1} parent=1 // loop_footer
      %s42 = sadd.s32 1, %s38
    $region7: #{tpu_custom_call.1} parent=1 // loop_footer_branch
      %37 = sbr.rel target = $region3
    $region8: #{tpu_custom_call.1} parent=1 // loop_exit
      _
    %2886 = vsyncpa [#allocation3], 1
    %s2887 = scalar_lea.sflag [#allocation3], 1
    %2888 = vsyncpa %s2887, 1
    %2889 = vsyncpa [#allocation6], 1
    %2890 = vsyncpa [#allocation9], 1
    %2891 = vsyncpa [#allocation12], 1
    %2892 = vsyncpa [#allocation15], 1
    %2893 = vsyncpa [#allocation4], 1
    %s2894 = scalar_lea.sflag [#allocation4], 1
    %2895 = vsyncpa %s2894, 1
    %2896 = vsyncpa [#allocation19], 1
    %s2897 = scalar_lea.sflag [#allocation19], 1
    %2898 = vsyncpa %s2897, 1

</llo_original>
